<compile_context>
chip_gen: v7x
topology: tpu7x:2x2x1
jax: 0.10.0
libtpu: 0.0.40
codegen_flags: <defaults>
</compile_context>

<pallas_src>
import functools
import numpy as np
import jax
import jax.numpy as jnp
from jax.experimental import pallas as pl
from jax.experimental.pallas import tpu as pltpu


def _round_up(x, m):
    return ((x + m - 1) // m) * m


# ----------------------------- Pallas kernel ------------------------------- #

def shufflenet_unit_kernel(xp_ref, mask_ref, w1_ref, b1_ref, w2_ref,
                           w3_ref, ws_ref, b3_ref, o_ref, *,
                           margin, out_len, Wp):
    Cin = xp_ref.shape[0]
    mid = w1_ref.shape[0]

    xp = xp_ref[...]                                        # (Cin, Lp)

    # --- GConv1 (grouped 1x1, BN1 + channel shuffle folded) + ReLU ----------
    y = jnp.dot(w1_ref[...], xp, preferred_element_type=jnp.float32) + b1_ref[...]
    # Zero the padding ring / margins: ReLU(bias) != 0 there, but the 3x3 conv
    # (padding=1 in the reference) must see zeros around the feature map.
    y = jnp.maximum(y, 0.0) * mask_ref[...]                 # (mid, Lp)

    # --- grouped 3x3 conv, stride 1, pad 1: nine shifted lane slices ---------
    # (BN2 scale folded into w2; BN2 bias pushed through GConv2 into b3.)
    acc = jnp.zeros((mid, out_len), jnp.float32)
    for kh in range(3):
        for kw in range(3):
            d = (kh - 1) * Wp + (kw - 1)
            yt = jax.lax.slice(y, (0, margin + d), (mid, margin + d + out_len))
            acc = acc + jnp.dot(w2_ref[kh * 3 + kw], yt,
                                preferred_element_type=jnp.float32)

    # --- GConv2 (BN3 folded) + grouped-1x1 shortcut + ReLU -------------------
    xc = jax.lax.slice(xp, (0, margin), (Cin, margin + out_len))
    out = (jnp.dot(w3_ref[...], acc, preferred_element_type=jnp.float32)
           + jnp.dot(ws_ref[...], xc, preferred_element_type=jnp.float32)
           + b3_ref[...])
    o_ref[...] = jnp.maximum(out, 0.0)                      # (Cout, out_len)


@jax.jit
def shufflenet_unit_pallas(x_nchw, dense_params):
    w1, b1, w2, w3, ws, b3 = dense_params
    N, Cin, H, W = x_nchw.shape
    mid = w1.shape[0]
    Cout = w3.shape[0]

    Hp, Wp = H + 2, W + 2                    # exact zero-ring pad
    HWp = Hp * Wp
    L = _round_up(HWp, 128)                  # lane-dense output width
    margin = _round_up(Wp + 1, 128)          # aligned front margin for tap slices
    Lp = margin + L + _round_up(Wp + 1, 128)

    # Spatial zero-ring pad, flatten spatial, lane-pad — no layout transposes.
    xflat = jnp.pad(x_nchw, ((0, 0), (0, 0), (1, 1), (1, 1))).reshape(N, Cin, HWp)
    xp = jnp.pad(xflat, ((0, 0), (0, 0), (margin, Lp - margin - HWp)))

    # Interior mask precomputed at trace time (1 inside the HxW interior, else 0).
    m2 = np.zeros((Hp, Wp), np.float32)
    m2[1:H + 1, 1:W + 1] = 1.0
    mk = np.zeros((1, Lp), np.float32)
    mk[0, margin:margin + HWp] = m2.reshape(-1)
    mask = jnp.asarray(mk)

    kernel = functools.partial(shufflenet_unit_kernel,
                               margin=margin, out_len=L, Wp=Wp)

    flops_img = (2 * Lp * mid * Cin + 9 * 2 * L * mid * mid
                 + 2 * L * Cout * mid + 2 * L * Cout * Cin)
    bytes_acc = 4 * (xp.size + N * Cout * L + mask.size + w1.size + b1.size
                     + w2.size + w3.size + ws.size + b3.size)

    out = pl.pallas_call(
        kernel,
        out_shape=jax.ShapeDtypeStruct((N, Cout, L), jnp.float32),
        grid=(N,),
        in_specs=[
            pl.BlockSpec((None, Cin, Lp), lambda n: (n, 0, 0)),
            pl.BlockSpec((1, Lp), lambda n: (0, 0)),
            pl.BlockSpec(w1.shape, lambda n: (0, 0)),
            pl.BlockSpec(b1.shape, lambda n: (0, 0)),
            pl.BlockSpec(w2.shape, lambda n: (0, 0, 0)),
            pl.BlockSpec(w3.shape, lambda n: (0, 0)),
            pl.BlockSpec(ws.shape, lambda n: (0, 0)),
            pl.BlockSpec(b3.shape, lambda n: (0, 0)),
        ],
        out_specs=pl.BlockSpec((None, Cout, L), lambda n: (n, 0, 0)),
        compiler_params=pltpu.CompilerParams(dimension_semantics=("parallel",)),
        cost_estimate=pl.CostEstimate(flops=int(N * flops_img),
                                      transcendentals=0,
                                      bytes_accessed=int(bytes_acc)),
    )(xp, mask, w1, b1, w2, w3, ws, b3)

    # Strip lane pad + padding ring; pure slice/reshape back to NCHW.
    out = out[:, :, :HWp].reshape(N, Cout, Hp, Wp)[:, :, 1:H + 1, 1:W + 1]
    return out


# ------------------------- parameter setup (glue) --------------------------- #

def init_params(key, in_ch, out_ch, groups):
    """Deterministic synthetic parameters matching the torch module's shapes.
    BatchNorm is treated in inference mode (gamma, beta, running_mean, running_var)."""
    mid = out_ch // 4
    ks = jax.random.split(key, 16)

    def w(k, shape):
        return 0.4 * jax.random.normal(k, shape, jnp.float32)

    def bn(k1, k2, k3, k4, c):
        gamma = 1.0 + 0.2 * jax.random.normal(k1, (c,), jnp.float32)
        beta = 0.1 * jax.random.normal(k2, (c,), jnp.float32)
        mean = 0.1 * jax.random.normal(k3, (c,), jnp.float32)
        var = 0.5 + jax.random.uniform(k4, (c,), jnp.float32)
        return (gamma, beta, mean, var)

    return dict(
        w_g1=w(ks[0], (mid, in_ch // groups, 1, 1)),
        w_dw=w(ks[1], (mid, mid // groups, 3, 3)),
        w_g2=w(ks[2], (out_ch, mid // groups, 1, 1)),
        w_sc=w(ks[3], (out_ch, in_ch // groups, 1, 1)),
        bn1=bn(ks[4], ks[5], ks[6], ks[7], mid),
        bn2=bn(ks[8], ks[9], ks[10], ks[11], mid),
        bn3=bn(ks[12], ks[13], ks[14], ks[15], out_ch),
    )


def _dense_1x1(w, groups):          # torch (O, I/g, 1, 1) -> dense (I, O)
    w = np.asarray(w)[:, :, 0, 0]
    O, icg = w.shape
    ocg = O // groups
    d = np.zeros((icg * groups, O), np.float32)
    for co in range(O):
        g = co // ocg
        d[g * icg:(g + 1) * icg, co] = w[co]
    return d


def _dense_3x3(w, groups):          # torch (O, I/g, 3, 3) -> dense (3, 3, I, O)
    w = np.asarray(w)
    O, icg, KH, KW = w.shape
    ocg = O // groups
    d = np.zeros((KH, KW, icg * groups, O), np.float32)
    for co in range(O):
        g = co // ocg
        d[:, :, g * icg:(g + 1) * icg, co] = np.transpose(w[co], (1, 2, 0))
    return d


def _bn_fold(gamma, beta, mean, var, eps=1e-5):
    s = np.asarray(gamma) / np.sqrt(np.asarray(var) + eps)
    b = np.asarray(beta) - np.asarray(mean) * s
    return s, b


def fold_dense(p, groups):
    """Densify grouped convs, fold BN (inference) + channel_shuffle, and orient
    every weight as (C_out, C_in) for the (C, HW) kernel layout."""
    mid = p['w_g1'].shape[0]
    s1, bb1 = _bn_fold(*p['bn1'])
    s2, bb2 = _bn_fold(*p['bn2'])
    s3, bb3 = _bn_fold(*p['bn3'])

    # GConv1 + BN1, with channel_shuffle folded into the output rows.
    w1d = _dense_1x1(p['w_g1'], groups) * s1[None, :]              # (Cin, mid)
    cpg = mid // groups
    perm = np.array([(c % groups) * cpg + (c // groups) for c in range(mid)])
    w1 = np.ascontiguousarray(w1d[:, perm].T)                      # (mid, Cin)
    b1 = bb1[perm][:, None]                                        # (mid, 1)

    # grouped 3x3 + BN2 scale; per-tap (mid_out, mid_in) matrices.
    w2d = _dense_3x3(p['w_dw'], groups) * s2[None, None, None, :]  # (3,3,in,out)
    w2 = np.ascontiguousarray(
        np.transpose(w2d.reshape(9, mid, mid), (0, 2, 1)))         # (9, out, in)

    # GConv2 + BN3; push BN2's bias through GConv2 into the output bias.
    w3 = np.ascontiguousarray(
        (_dense_1x1(p['w_g2'], groups) * s3[None, :]).T)           # (Cout, mid)
    b3 = (bb3 + w3 @ bb2)[:, None]                                 # (Cout, 1)

    # grouped-1x1 shortcut.
    ws = np.ascontiguousarray(_dense_1x1(p['w_sc'], groups).T)     # (Cout, Cin)

    to = lambda a: jnp.asarray(a, jnp.float32)
    return (to(w1), to(b1), to(w2), to(w3), to(ws), to(b3))


# -------------------------- pure-JAX reference ------------------------------ #

def ref_forward(x, p, groups, stride=1):
    dn = ('NCHW', 'OIHW', 'NCHW')
    prec = jax.lax.Precision.HIGHEST

    def conv(x, w, stride, pad, g):
        return jax.lax.conv_general_dilated(
            x, w, (stride, stride), [(pad, pad), (pad, pad)],
            dimension_numbers=dn, feature_group_count=g, precision=prec)

    def bn(x, bnp):
        gamma, beta, mean, var = bnp
        s = gamma / jnp.sqrt(var + 1e-5)
        return x * s[None, :, None, None] + (beta - mean * s)[None, :, None, None]

    y = jax.nn.relu(bn(conv(x, p['w_g1'], 1, 0, groups), p['bn1']))
    B, C, H, W = y.shape
    y = y.reshape(B, groups, C // groups, H, W).transpose(0, 2, 1, 3, 4).reshape(B, C, H, W)
    y = bn(conv(y, p['w_dw'], stride, 1, groups), p['bn2'])
    y = bn(conv(y, p['w_g2'], 1, 0, groups), p['bn3'])
    short = conv(x, p['w_sc'], stride, 0, groups)
    return jax.nn.relu(y + short)


# ---------------------------------- main ------------------------------------ #

if __name__ == "__main__":
    N, Cin, H, W = 2, 8, 16, 16
    Cout, stride, groups_arg = 16, 1, 2
    groups = 1 if Cin == 24 else groups_arg   # mirrors the PyTorch __init__ rule
    # TODO(synk): stride == 2 path not implemented; the reference forward
    # double-downsamples the shortcut (strided conv followed by avgpool) and
    # would fail at the residual add, so only stride == 1 is supported here.

    key = jax.random.PRNGKey(0)
    kx, kp = jax.random.split(key)
    x = jax.random.normal(kx, (N, Cin, H, W), jnp.float32)

    params = init_params(kp, Cin, Cout, groups)
    dense = fold_dense(params, groups)

    out = shufflenet_unit_pallas(x, dense)
    out = jax.block_until_ready(out)

    ref = ref_forward(x, params, groups, stride)
    np.testing.assert_allclose(np.asarray(out), np.asarray(ref),
                               rtol=2e-3, atol=2e-3)
    print("KERNEL_OK")
</pallas_src>

<mosaic_0001>
module attributes {stable_mosaic.version = 11 : i64} {
  func.func @shufflenet_unit_kernel(%arg0: i32, %arg1: memref<1x8x640xf32, #tpu.memory_space<vmem>>, %arg2: memref<1x640xf32, #tpu.memory_space<vmem>>, %arg3: memref<4x8xf32, #tpu.memory_space<vmem>>, %arg4: memref<4x1xf32, #tpu.memory_space<vmem>>, %arg5: memref<9x4x4xf32, #tpu.memory_space<vmem>>, %arg6: memref<16x4xf32, #tpu.memory_space<vmem>>, %arg7: memref<16x8xf32, #tpu.memory_space<vmem>>, %arg8: memref<16x1xf32, #tpu.memory_space<vmem>>, %arg9: memref<1x16x384xf32, #tpu.memory_space<vmem>>) attributes {dimension_semantics = [#tpu.dimension_semantics<parallel>], iteration_bounds = array<i64: 2>, scalar_prefetch = 0 : i64, scratch_operands = 0 : i64, tpu.core_type = #tpu.core_type<tc>, window_params = [{transform_indices = @transform_0, window_bounds = array<i64: 1, 8, 640>}, {pipeline_mode = #tpu.pipeline_mode<synchronous>, transform_indices = @transform_1, window_bounds = array<i64: 1, 640>}, {pipeline_mode = #tpu.pipeline_mode<synchronous>, transform_indices = @transform_2, window_bounds = array<i64: 4, 8>}, {pipeline_mode = #tpu.pipeline_mode<synchronous>, transform_indices = @transform_3, window_bounds = array<i64: 4, 1>}, {pipeline_mode = #tpu.pipeline_mode<synchronous>, transform_indices = @transform_4, window_bounds = array<i64: 9, 4, 4>}, {pipeline_mode = #tpu.pipeline_mode<synchronous>, transform_indices = @transform_5, window_bounds = array<i64: 16, 4>}, {pipeline_mode = #tpu.pipeline_mode<synchronous>, transform_indices = @transform_6, window_bounds = array<i64: 16, 8>}, {pipeline_mode = #tpu.pipeline_mode<synchronous>, transform_indices = @transform_7, window_bounds = array<i64: 16, 1>}, {transform_indices = @transform_8, window_bounds = array<i64: 1, 16, 384>}]} {
    %c0 = arith.constant 0 : index
    %c0_0 = arith.constant 0 : index
    %c0_1 = arith.constant 0 : index
    %0 = vector.load %arg1[%c0, %c0_0, %c0_1] : memref<1x8x640xf32, #tpu.memory_space<vmem>>, vector<1x8x640xf32>
    %1 = vector.shape_cast %0 : vector<1x8x640xf32> to vector<8x640xf32>
    %c0_2 = arith.constant 0 : index
    %c0_3 = arith.constant 0 : index
    %2 = vector.load %arg3[%c0_2, %c0_3] : memref<4x8xf32, #tpu.memory_space<vmem>>, vector<4x8xf32>
    %cst = arith.constant dense<0.000000e+00> : vector<4x640xf32>
    %3 = tpu.matmul %2, %1, %cst {dimension_numbers = #tpu.dot_dimension_numbers<[1], [0], [0], [1], [0, 0, 1, 1], [], []>} : vector<4x8xf32>, vector<8x640xf32>, vector<4x640xf32> -> vector<4x640xf32>
    %c0_4 = arith.constant 0 : index
    %c0_5 = arith.constant 0 : index
    %4 = vector.load %arg4[%c0_4, %c0_5] : memref<4x1xf32, #tpu.memory_space<vmem>>, vector<4x1xf32>
    %5 = vector.broadcast %4 : vector<4x1xf32> to vector<4x640xf32>
    %6 = arith.addf %3, %5 : vector<4x640xf32>
    %cst_6 = arith.constant 0.000000e+00 : f32
    %7 = vector.broadcast %cst_6 : f32 to vector<4x640xf32>
    %8 = arith.maximumf %6, %7 : vector<4x640xf32>
    %c0_7 = arith.constant 0 : index
    %c0_8 = arith.constant 0 : index
    %9 = vector.load %arg2[%c0_7, %c0_8] : memref<1x640xf32, #tpu.memory_space<vmem>>, vector<1x640xf32>
    %10 = vector.broadcast %9 : vector<1x640xf32> to vector<4x640xf32>
    %11 = arith.mulf %8, %10 : vector<4x640xf32>
    %cst_9 = arith.constant 0.000000e+00 : f32
    %12 = vector.broadcast %cst_9 : f32 to vector<4x384xf32>
    %13 = vector.extract_strided_slice %11 {offsets = [0, 109], sizes = [4, 384], strides = [1, 1]} : vector<4x640xf32> to vector<4x384xf32>
    %c0_10 = arith.constant 0 : index
    %c0_11 = arith.constant 0 : index
    %c0_12 = arith.constant 0 : index
    %14 = vector.load %arg5[%c0_10, %c0_11, %c0_12] : memref<9x4x4xf32, #tpu.memory_space<vmem>>, vector<1x4x4xf32>
    %15 = vector.shape_cast %14 : vector<1x4x4xf32> to vector<4x4xf32>
    %cst_13 = arith.constant dense<0.000000e+00> : vector<4x384xf32>
    %16 = tpu.matmul %15, %13, %cst_13 {dimension_numbers = #tpu.dot_dimension_numbers<[1], [0], [0], [1], [0, 0, 1, 1], [], []>} : vector<4x4xf32>, vector<4x384xf32>, vector<4x384xf32> -> vector<4x384xf32>
    %17 = arith.addf %12, %16 : vector<4x384xf32>
    %18 = vector.extract_strided_slice %11 {offsets = [0, 110], sizes = [4, 384], strides = [1, 1]} : vector<4x640xf32> to vector<4x384xf32>
    %c1 = arith.constant 1 : index
    %c0_14 = arith.constant 0 : index
    %c0_15 = arith.constant 0 : index
    %19 = vector.load %arg5[%c1, %c0_14, %c0_15] : memref<9x4x4xf32, #tpu.memory_space<vmem>>, vector<1x4x4xf32>
    %20 = vector.shape_cast %19 : vector<1x4x4xf32> to vector<4x4xf32>
    %cst_16 = arith.constant dense<0.000000e+00> : vector<4x384xf32>
    %21 = tpu.matmul %20, %18, %cst_16 {dimension_numbers = #tpu.dot_dimension_numbers<[1], [0], [0], [1], [0, 0, 1, 1], [], []>} : vector<4x4xf32>, vector<4x384xf32>, vector<4x384xf32> -> vector<4x384xf32>
    %22 = arith.addf %17, %21 : vector<4x384xf32>
    %23 = vector.extract_strided_slice %11 {offsets = [0, 111], sizes = [4, 384], strides = [1, 1]} : vector<4x640xf32> to vector<4x384xf32>
    %c2 = arith.constant 2 : index
    %c0_17 = arith.constant 0 : index
    %c0_18 = arith.constant 0 : index
    %24 = vector.load %arg5[%c2, %c0_17, %c0_18] : memref<9x4x4xf32, #tpu.memory_space<vmem>>, vector<1x4x4xf32>
    %25 = vector.shape_cast %24 : vector<1x4x4xf32> to vector<4x4xf32>
    %cst_19 = arith.constant dense<0.000000e+00> : vector<4x384xf32>
    %26 = tpu.matmul %25, %23, %cst_19 {dimension_numbers = #tpu.dot_dimension_numbers<[1], [0], [0], [1], [0, 0, 1, 1], [], []>} : vector<4x4xf32>, vector<4x384xf32>, vector<4x384xf32> -> vector<4x384xf32>
    %27 = arith.addf %22, %26 : vector<4x384xf32>
    %28 = vector.extract_strided_slice %11 {offsets = [0, 127], sizes = [4, 384], strides = [1, 1]} : vector<4x640xf32> to vector<4x384xf32>
    %c3 = arith.constant 3 : index
    %c0_20 = arith.constant 0 : index
    %c0_21 = arith.constant 0 : index
    %29 = vector.load %arg5[%c3, %c0_20, %c0_21] : memref<9x4x4xf32, #tpu.memory_space<vmem>>, vector<1x4x4xf32>
    %30 = vector.shape_cast %29 : vector<1x4x4xf32> to vector<4x4xf32>
    %cst_22 = arith.constant dense<0.000000e+00> : vector<4x384xf32>
    %31 = tpu.matmul %30, %28, %cst_22 {dimension_numbers = #tpu.dot_dimension_numbers<[1], [0], [0], [1], [0, 0, 1, 1], [], []>} : vector<4x4xf32>, vector<4x384xf32>, vector<4x384xf32> -> vector<4x384xf32>
    %32 = arith.addf %27, %31 : vector<4x384xf32>
    %33 = vector.extract_strided_slice %11 {offsets = [0, 128], sizes = [4, 384], strides = [1, 1]} : vector<4x640xf32> to vector<4x384xf32>
    %c4 = arith.constant 4 : index
    %c0_23 = arith.constant 0 : index
    %c0_24 = arith.constant 0 : index
    %34 = vector.load %arg5[%c4, %c0_23, %c0_24] : memref<9x4x4xf32, #tpu.memory_space<vmem>>, vector<1x4x4xf32>
    %35 = vector.shape_cast %34 : vector<1x4x4xf32> to vector<4x4xf32>
    %cst_25 = arith.constant dense<0.000000e+00> : vector<4x384xf32>
    %36 = tpu.matmul %35, %33, %cst_25 {dimension_numbers = #tpu.dot_dimension_numbers<[1], [0], [0], [1], [0, 0, 1, 1], [], []>} : vector<4x4xf32>, vector<4x384xf32>, vector<4x384xf32> -> vector<4x384xf32>
    %37 = arith.addf %32, %36 : vector<4x384xf32>
    %38 = vector.extract_strided_slice %11 {offsets = [0, 129], sizes = [4, 384], strides = [1, 1]} : vector<4x640xf32> to vector<4x384xf32>
    %c5 = arith.constant 5 : index
    %c0_26 = arith.constant 0 : index
    %c0_27 = arith.constant 0 : index
    %39 = vector.load %arg5[%c5, %c0_26, %c0_27] : memref<9x4x4xf32, #tpu.memory_space<vmem>>, vector<1x4x4xf32>
    %40 = vector.shape_cast %39 : vector<1x4x4xf32> to vector<4x4xf32>
    %cst_28 = arith.constant dense<0.000000e+00> : vector<4x384xf32>
    %41 = tpu.matmul %40, %38, %cst_28 {dimension_numbers = #tpu.dot_dimension_numbers<[1], [0], [0], [1], [0, 0, 1, 1], [], []>} : vector<4x4xf32>, vector<4x384xf32>, vector<4x384xf32> -> vector<4x384xf32>
    %42 = arith.addf %37, %41 : vector<4x384xf32>
    %43 = vector.extract_strided_slice %11 {offsets = [0, 145], sizes = [4, 384], strides = [1, 1]} : vector<4x640xf32> to vector<4x384xf32>
    %c6 = arith.constant 6 : index
    %c0_29 = arith.constant 0 : index
    %c0_30 = arith.constant 0 : index
    %44 = vector.load %arg5[%c6, %c0_29, %c0_30] : memref<9x4x4xf32, #tpu.memory_space<vmem>>, vector<1x4x4xf32>
    %45 = vector.shape_cast %44 : vector<1x4x4xf32> to vector<4x4xf32>
    %cst_31 = arith.constant dense<0.000000e+00> : vector<4x384xf32>
    %46 = tpu.matmul %45, %43, %cst_31 {dimension_numbers = #tpu.dot_dimension_numbers<[1], [0], [0], [1], [0, 0, 1, 1], [], []>} : vector<4x4xf32>, vector<4x384xf32>, vector<4x384xf32> -> vector<4x384xf32>
    %47 = arith.addf %42, %46 : vector<4x384xf32>
    %48 = vector.extract_strided_slice %11 {offsets = [0, 146], sizes = [4, 384], strides = [1, 1]} : vector<4x640xf32> to vector<4x384xf32>
    %c7 = arith.constant 7 : index
    %c0_32 = arith.constant 0 : index
    %c0_33 = arith.constant 0 : index
    %49 = vector.load %arg5[%c7, %c0_32, %c0_33] : memref<9x4x4xf32, #tpu.memory_space<vmem>>, vector<1x4x4xf32>
    %50 = vector.shape_cast %49 : vector<1x4x4xf32> to vector<4x4xf32>
    %cst_34 = arith.constant dense<0.000000e+00> : vector<4x384xf32>
    %51 = tpu.matmul %50, %48, %cst_34 {dimension_numbers = #tpu.dot_dimension_numbers<[1], [0], [0], [1], [0, 0, 1, 1], [], []>} : vector<4x4xf32>, vector<4x384xf32>, vector<4x384xf32> -> vector<4x384xf32>
    %52 = arith.addf %47, %51 : vector<4x384xf32>
    %53 = vector.extract_strided_slice %11 {offsets = [0, 147], sizes = [4, 384], strides = [1, 1]} : vector<4x640xf32> to vector<4x384xf32>
    %c8 = arith.constant 8 : index
    %c0_35 = arith.constant 0 : index
    %c0_36 = arith.constant 0 : index
    %54 = vector.load %arg5[%c8, %c0_35, %c0_36] : memref<9x4x4xf32, #tpu.memory_space<vmem>>, vector<1x4x4xf32>
    %55 = vector.shape_cast %54 : vector<1x4x4xf32> to vector<4x4xf32>
    %cst_37 = arith.constant dense<0.000000e+00> : vector<4x384xf32>
    %56 = tpu.matmul %55, %53, %cst_37 {dimension_numbers = #tpu.dot_dimension_numbers<[1], [0], [0], [1], [0, 0, 1, 1], [], []>} : vector<4x4xf32>, vector<4x384xf32>, vector<4x384xf32> -> vector<4x384xf32>
    %57 = arith.addf %52, %56 : vector<4x384xf32>
    %58 = vector.extract_strided_slice %1 {offsets = [0, 128], sizes = [8, 384], strides = [1, 1]} : vector<8x640xf32> to vector<8x384xf32>
    %c0_38 = arith.constant 0 : index
    %c0_39 = arith.constant 0 : index
    %59 = vector.load %arg6[%c0_38, %c0_39] : memref<16x4xf32, #tpu.memory_space<vmem>>, vector<16x4xf32>
    %cst_40 = arith.constant dense<0.000000e+00> : vector<16x384xf32>
    %60 = tpu.matmul %59, %57, %cst_40 {dimension_numbers = #tpu.dot_dimension_numbers<[1], [0], [0], [1], [0, 0, 1, 1], [], []>} : vector<16x4xf32>, vector<4x384xf32>, vector<16x384xf32> -> vector<16x384xf32>
    %c0_41 = arith.constant 0 : index
    %c0_42 = arith.constant 0 : index
    %61 = vector.load %arg7[%c0_41, %c0_42] : memref<16x8xf32, #tpu.memory_space<vmem>>, vector<16x8xf32>
    %cst_43 = arith.constant dense<0.000000e+00> : vector<16x384xf32>
    %62 = tpu.matmul %61, %58, %cst_43 {dimension_numbers = #tpu.dot_dimension_numbers<[1], [0], [0], [1], [0, 0, 1, 1], [], []>} : vector<16x8xf32>, vector<8x384xf32>, vector<16x384xf32> -> vector<16x384xf32>
    %63 = arith.addf %60, %62 : vector<16x384xf32>
    %c0_44 = arith.constant 0 : index
    %c0_45 = arith.constant 0 : index
    %64 = vector.load %arg8[%c0_44, %c0_45] : memref<16x1xf32, #tpu.memory_space<vmem>>, vector<16x1xf32>
    %65 = vector.broadcast %64 : vector<16x1xf32> to vector<16x384xf32>
    %66 = arith.addf %63, %65 : vector<16x384xf32>
    %cst_46 = arith.constant 0.000000e+00 : f32
    %67 = vector.broadcast %cst_46 : f32 to vector<16x384xf32>
    %68 = arith.maximumf %66, %67 : vector<16x384xf32>
    %c0_47 = arith.constant 0 : index
    %c0_48 = arith.constant 0 : index
    %c0_49 = arith.constant 0 : index
    %69 = vector.load %arg9[%c0_47, %c0_48, %c0_49] : memref<1x16x384xf32, #tpu.memory_space<vmem>>, vector<1x16x384xf32>
    %70 = vector.shape_cast %69 : vector<1x16x384xf32> to vector<16x384xf32>
    %71 = vector.shape_cast %68 : vector<16x384xf32> to vector<1x16x384xf32>
    tpu.vector_store %arg9[%c0_47, %c0_48, %c0_49], %71 {strides = array<i32>} : memref<1x16x384xf32, #tpu.memory_space<vmem>>, vector<1x16x384xf32>,
    return
  }
  func.func @transform_0(%arg0: i32) -> (i32, i32, i32) {
    %c0_i32 = arith.constant 0 : i32
    %c0_i32_0 = arith.constant 0 : i32
    %c0_i32_1 = arith.constant 0 : i32
    return %arg0, %c0_i32, %c0_i32_0 : i32, i32, i32
  }
  func.func @transform_1(%arg0: i32) -> (i32, i32) {
    %c0_i32 = arith.constant 0 : i32
    %c0_i32_0 = arith.constant 0 : i32
    %c0_i32_1 = arith.constant 0 : i32
    return %c0_i32, %c0_i32_0 : i32, i32
  }
  func.func @transform_2(%arg0: i32) -> (i32, i32) {
    %c0_i32 = arith.constant 0 : i32
    %c0_i32_0 = arith.constant 0 : i32
    %c0_i32_1 = arith.constant 0 : i32
    return %c0_i32, %c0_i32_0 : i32, i32
  }
  func.func @transform_3(%arg0: i32) -> (i32, i32) {
    %c0_i32 = arith.constant 0 : i32
    %c0_i32_0 = arith.constant 0 : i32
    %c0_i32_1 = arith.constant 0 : i32
    return %c0_i32, %c0_i32_0 : i32, i32
  }
  func.func @transform_4(%arg0: i32) -> (i32, i32, i32) {
    %c0_i32 = arith.constant 0 : i32
    %c0_i32_0 = arith.constant 0 : i32
    %c0_i32_1 = arith.constant 0 : i32
    %c0_i32_2 = arith.constant 0 : i32
    return %c0_i32, %c0_i32_0, %c0_i32_1 : i32, i32, i32
  }
  func.func @transform_5(%arg0: i32) -> (i32, i32) {
    %c0_i32 = arith.constant 0 : i32
    %c0_i32_0 = arith.constant 0 : i32
    %c0_i32_1 = arith.constant 0 : i32
    return %c0_i32, %c0_i32_0 : i32, i32
  }
  func.func @transform_6(%arg0: i32) -> (i32, i32) {
    %c0_i32 = arith.constant 0 : i32
    %c0_i32_0 = arith.constant 0 : i32
    %c0_i32_1 = arith.constant 0 : i32
    return %c0_i32, %c0_i32_0 : i32, i32
  }
  func.func @transform_7(%arg0: i32) -> (i32, i32) {
    %c0_i32 = arith.constant 0 : i32
    %c0_i32_0 = arith.constant 0 : i32
    %c0_i32_1 = arith.constant 0 : i32
    return %c0_i32, %c0_i32_0 : i32, i32
  }
  func.func @transform_8(%arg0: i32) -> (i32, i32, i32) {
    %c0_i32 = arith.constant 0 : i32
    %c0_i32_0 = arith.constant 0 : i32
    %c0_i32_1 = arith.constant 0 : i32
    return %arg0, %c0_i32, %c0_i32_0 : i32, i32, i32
  }
}

</mosaic_0001>

<llo_original>
// kernel: shufflenet_unit_pallas.1
$region0: #{shufflenet_unit_pallas.1}
  #allocation0 [shape = 'u32[]', space=smem, size = 0x4, offset = 0x4, fixed_abs, tag = 'smem constant byte address 0x4 - core index']
  #allocation1 [shape = 'u32[144,128]{1,0:T(1,128)}', space=vmem, size = 0x12000, scoped, tag = 'internal scratch']
  %s0 = inlined_call_operand.vmem [shape: f32[2,8,640], index: 0, kind: input, shape index: {}]
  %s1 = inlined_call_operand.vmem [shape: f32[1,640], index: 1, kind: input, shape index: {}]
  %s2 = inlined_call_operand.vmem [shape: f32[4,8], index: 2, kind: input, shape index: {}]
  %s3 = inlined_call_operand.vmem [shape: f32[4,1], index: 3, kind: input, shape index: {}]
  %s4 = inlined_call_operand.vmem [shape: f32[9,4,4], index: 4, kind: input, shape index: {}]
  %s5 = inlined_call_operand.vmem [shape: f32[16,4], index: 5, kind: input, shape index: {}]
  %s6 = inlined_call_operand.vmem [shape: f32[16,8], index: 6, kind: input, shape index: {}]
  %s7 = inlined_call_operand.vmem [shape: f32[16,1], index: 7, kind: input, shape index: {}]
  %s8 = inlined_call_operand.vmem [shape: f32[2,16,384], index: 8, kind: output, shape index: {}]
  %s9 = sld [smem:[#allocation0]]
  $region65: #{shufflenet_unit_pallas.1} parent=0
    _
  %s11 = ssub.s32 1, %s9
  %s12 = scalar_select 0, %s11, %s9
  loop: start=0, step=1, limit=4
  $region2: #{shufflenet_unit_pallas.1} parent=0 // loop_pre_header
    _
  $region3: #{shufflenet_unit_pallas.1} parent=0 // loop_header
    %s14 = sphi 0, %s18
    %p15 = scmp.ge.s32.totalorder %s14, 4
    %s24 = sphi 0, %s26
    %s27 = sphi 0, %s24
    %s28 = sphi 0, %s27
    %s44 = sphi 0, %s28
    %s48 = sphi 0, %s48
    %s50 = sphi 0, %s48
    %s51 = sphi 0, %s50
    %s65 = sphi 0, %s51
    %s69 = sphi 0, %s69
    %s71 = sphi 0, %s69
    %s72 = sphi 0, %s71
    %s86 = sphi 0, %s72
    %s90 = sphi 0, %s90
    %s92 = sphi 0, %s90
    %s93 = sphi 0, %s92
    %s107 = sphi 0, %s93
    %s111 = sphi 0, %s111
    %s113 = sphi 0, %s111
    %s114 = sphi 0, %s113
    %s128 = sphi 0, %s114
    %s132 = sphi 0, %s132
    %s134 = sphi 0, %s132
    %s135 = sphi 0, %s134
    %s149 = sphi 0, %s135
    %s153 = sphi 0, %s153
    %s155 = sphi 0, %s153
    %s156 = sphi 0, %s155
    %s170 = sphi 0, %s156
    %s174 = sphi 0, %s174
    %s176 = sphi 0, %s174
    %s177 = sphi 0, %s176
    %s191 = sphi 0, %s177
    %s197 = sphi 0, %s199
    %s200 = sphi 0, %s197
    %s201 = sphi 0, %s200
    %s217 = sphi 0, %s201
  $region4: #{shufflenet_unit_pallas.1} parent=0 // loop_header_branch
    %17 = sbr.rel (%p15) target = $region8
  $region5: #{shufflenet_unit_pallas.1} parent=0 // loop_body
    %s19 = ssub.s32 %s14, 1
    %s20 = ssub.s32 %s14, 2
    %s21 = sadd.s32 %s14, 1
    %s22 = ssub.s32 %s14, %s21
    %p23 = scmp.eq.s32.totalorder %s22, 0
    %s25 = sadd.s32 %s24, 1
    %s26 = scalar_select %p23, %s24, %s25
    %p29 = pneg %p23
    %p30 = scmp.eq.s32.totalorder %s14, 1
    %p31 = por %p29, %p30
    %p32 = scmp.ne.s32.totalorder %s24, %s27
    %p33 = scmp.eq.s32.totalorder %s14, 0
    %p34 = por %p32, %p33
    %p35 = scmp.ne.s32.totalorder %s24, %s27
    %p36 = scmp.eq.s32.totalorder %s19, 1
    %p37 = por %p35, %p36
    %p38 = scmp.ne.s32.totalorder %s27, %s28
    %p39 = scmp.eq.s32.totalorder %s19, 0
    %p40 = por %p38, %p39
    %p41 = scmp.ne.s32.totalorder %s27, %s28
    %p42 = scmp.eq.s32.totalorder %s20, 1
    %p43 = por %p41, %p42
    %p45 = scmp.ne.s32.totalorder %s28, %s44
    %p46 = scmp.eq.s32.totalorder %s20, 0
    %p47 = por %p45, %p46
    %s49 = sadd.s32 %s48, 1
    %p52 = scmp.eq.s32.totalorder %s14, 1
    %p53 = scmp.ne.s32.totalorder %s48, %s50
    %p54 = scmp.eq.s32.totalorder %s14, 0
    %p55 = por %p53, %p54
    %p56 = scmp.ne.s32.totalorder %s48, %s50
    %p57 = scmp.eq.s32.totalorder %s19, 1
    %p58 = por %p56, %p57
    %p59 = scmp.ne.s32.totalorder %s50, %s51
    %p60 = scmp.eq.s32.totalorder %s19, 0
    %p61 = por %p59, %p60
    %p62 = scmp.ne.s32.totalorder %s50, %s51
    %p63 = scmp.eq.s32.totalorder %s20, 1
    %p64 = por %p62, %p63
    %p66 = scmp.ne.s32.totalorder %s51, %s65
    %p67 = scmp.eq.s32.totalorder %s20, 0
    %p68 = por %p66, %p67
    %s70 = sadd.s32 %s69, 1
    %p73 = scmp.eq.s32.totalorder %s14, 1
    %p74 = scmp.ne.s32.totalorder %s69, %s71
    %p75 = scmp.eq.s32.totalorder %s14, 0
    %p76 = por %p74, %p75
    %p77 = scmp.ne.s32.totalorder %s69, %s71
    %p78 = scmp.eq.s32.totalorder %s19, 1
    %p79 = por %p77, %p78
    %p80 = scmp.ne.s32.totalorder %s71, %s72
    %p81 = scmp.eq.s32.totalorder %s19, 0
    %p82 = por %p80, %p81
    %p83 = scmp.ne.s32.totalorder %s71, %s72
    %p84 = scmp.eq.s32.totalorder %s20, 1
    %p85 = por %p83, %p84
    %p87 = scmp.ne.s32.totalorder %s72, %s86
    %p88 = scmp.eq.s32.totalorder %s20, 0
    %p89 = por %p87, %p88
    %s91 = sadd.s32 %s90, 1
    %p94 = scmp.eq.s32.totalorder %s14, 1
    %p95 = scmp.ne.s32.totalorder %s90, %s92
    %p96 = scmp.eq.s32.totalorder %s14, 0
    %p97 = por %p95, %p96
    %p98 = scmp.ne.s32.totalorder %s90, %s92
    %p99 = scmp.eq.s32.totalorder %s19, 1
    %p100 = por %p98, %p99
    %p101 = scmp.ne.s32.totalorder %s92, %s93
    %p102 = scmp.eq.s32.totalorder %s19, 0
    %p103 = por %p101, %p102
    %p104 = scmp.ne.s32.totalorder %s92, %s93
    %p105 = scmp.eq.s32.totalorder %s20, 1
    %p106 = por %p104, %p105
    %p108 = scmp.ne.s32.totalorder %s93, %s107
    %p109 = scmp.eq.s32.totalorder %s20, 0
    %p110 = por %p108, %p109
    %s112 = sadd.s32 %s111, 1
    %p115 = scmp.eq.s32.totalorder %s14, 1
    %p116 = scmp.ne.s32.totalorder %s111, %s113
    %p117 = scmp.eq.s32.totalorder %s14, 0
    %p118 = por %p116, %p117
    %p119 = scmp.ne.s32.totalorder %s111, %s113
    %p120 = scmp.eq.s32.totalorder %s19, 1
    %p121 = por %p119, %p120
    %p122 = scmp.ne.s32.totalorder %s113, %s114
    %p123 = scmp.eq.s32.totalorder %s19, 0
    %p124 = por %p122, %p123
    %p125 = scmp.ne.s32.totalorder %s113, %s114
    %p126 = scmp.eq.s32.totalorder %s20, 1
    %p127 = por %p125, %p126
    %p129 = scmp.ne.s32.totalorder %s114, %s128
    %p130 = scmp.eq.s32.totalorder %s20, 0
    %p131 = por %p129, %p130
    %s133 = sadd.s32 %s132, 1
    %p136 = scmp.eq.s32.totalorder %s14, 1
    %p137 = scmp.ne.s32.totalorder %s132, %s134
    %p138 = scmp.eq.s32.totalorder %s14, 0
    %p139 = por %p137, %p138
    %p140 = scmp.ne.s32.totalorder %s132, %s134
    %p141 = scmp.eq.s32.totalorder %s19, 1
    %p142 = por %p140, %p141
    %p143 = scmp.ne.s32.totalorder %s134, %s135
    %p144 = scmp.eq.s32.totalorder %s19, 0
    %p145 = por %p143, %p144
    %p146 = scmp.ne.s32.totalorder %s134, %s135
    %p147 = scmp.eq.s32.totalorder %s20, 1
    %p148 = por %p146, %p147
    %p150 = scmp.ne.s32.totalorder %s135, %s149
    %p151 = scmp.eq.s32.totalorder %s20, 0
    %p152 = por %p150, %p151
    %s154 = sadd.s32 %s153, 1
    %p157 = scmp.eq.s32.totalorder %s14, 1
    %p158 = scmp.ne.s32.totalorder %s153, %s155
    %p159 = scmp.eq.s32.totalorder %s14, 0
    %p160 = por %p158, %p159
    %p161 = scmp.ne.s32.totalorder %s153, %s155
    %p162 = scmp.eq.s32.totalorder %s19, 1
    %p163 = por %p161, %p162
    %p164 = scmp.ne.s32.totalorder %s155, %s156
    %p165 = scmp.eq.s32.totalorder %s19, 0
    %p166 = por %p164, %p165
    %p167 = scmp.ne.s32.totalorder %s155, %s156
    %p168 = scmp.eq.s32.totalorder %s20, 1
    %p169 = por %p167, %p168
    %p171 = scmp.ne.s32.totalorder %s156, %s170
    %p172 = scmp.eq.s32.totalorder %s20, 0
    %p173 = por %p171, %p172
    %s175 = sadd.s32 %s174, 1
    %p178 = scmp.eq.s32.totalorder %s14, 1
    %p179 = scmp.ne.s32.totalorder %s174, %s176
    %p180 = scmp.eq.s32.totalorder %s14, 0
    %p181 = por %p179, %p180
    %p182 = scmp.ne.s32.totalorder %s174, %s176
    %p183 = scmp.eq.s32.totalorder %s19, 1
    %p184 = por %p182, %p183
    %p185 = scmp.ne.s32.totalorder %s176, %s177
    %p186 = scmp.eq.s32.totalorder %s19, 0
    %p187 = por %p185, %p186
    %p188 = scmp.ne.s32.totalorder %s176, %s177
    %p189 = scmp.eq.s32.totalorder %s20, 1
    %p190 = por %p188, %p189
    %p192 = scmp.ne.s32.totalorder %s177, %s191
    %p193 = scmp.eq.s32.totalorder %s20, 0
    %p194 = por %p192, %p193
    %s195 = ssub.s32 %s14, %s21
    %p196 = scmp.eq.s32.totalorder %s195, 0
    %s198 = sadd.s32 %s197, 1
    %s199 = scalar_select %p196, %s197, %s198
    %p202 = pneg %p196
    %p203 = scmp.eq.s32.totalorder %s14, 1
    %p204 = por %p202, %p203
    %p205 = scmp.ne.s32.totalorder %s197, %s200
    %p206 = scmp.eq.s32.totalorder %s14, 0
    %p207 = por %p205, %p206
    %p208 = scmp.ne.s32.totalorder %s197, %s200
    %p209 = scmp.eq.s32.totalorder %s19, 1
    %p210 = por %p208, %p209
    %p211 = scmp.ne.s32.totalorder %s200, %s201
    %p212 = scmp.eq.s32.totalorder %s19, 0
    %p213 = por %p211, %p212
    %p214 = scmp.ne.s32.totalorder %s200, %s201
    %p215 = scmp.eq.s32.totalorder %s20, 1
    %p216 = por %p214, %p215
    %p218 = scmp.ne.s32.totalorder %s201, %s217
    %p219 = scmp.eq.s32.totalorder %s20, 0
    %p220 = por %p218, %p219
    %p221 = scmp.le.s32.totalorder 1, %s14
    %p222 = scmp.lt.s32.totalorder %s14, 3
    %p223 = pnand %p221, %p222
    %p224 = pneg %p223
    // Predicated region
    $region9: #{shufflenet_unit_pallas.1} parent=5 // pred_check
      _
    $region10: #{shufflenet_unit_pallas.1} parent=5 // pred_check_branch
      %226 = sbr.rel (%p223) target = $region12
    $region11: #{shufflenet_unit_pallas.1} parent=5 // pred_region
      %s227 = ssub.s32 %s14, 1
      // Predicated region
      $region13: #{shufflenet_unit_pallas.1} parent=11 // pred_check
        %p228 = pneg %p61
      $region14: #{shufflenet_unit_pallas.1} parent=11 // pred_check_branch
        %230 = sbr.rel (%p228) target = $region16
      $region15: #{shufflenet_unit_pallas.1} parent=11 // pred_region
        _
      $region16: #{shufflenet_unit_pallas.1} parent=11 // pred_fallthru
        _
      // Predicated region
      $region17: #{shufflenet_unit_pallas.1} parent=11 // pred_check
        %p231 = pneg %p82
      $region18: #{shufflenet_unit_pallas.1} parent=11 // pred_check_branch
        %233 = sbr.rel (%p231) target = $region20
      $region19: #{shufflenet_unit_pallas.1} parent=11 // pred_region
        _
      $region20: #{shufflenet_unit_pallas.1} parent=11 // pred_fallthru
        _
      // Predicated region
      $region21: #{shufflenet_unit_pallas.1} parent=11 // pred_check
        %p234 = pneg %p103
      $region22: #{shufflenet_unit_pallas.1} parent=11 // pred_check_branch
        %236 = sbr.rel (%p234) target = $region24
      $region23: #{shufflenet_unit_pallas.1} parent=11 // pred_region
        _
      $region24: #{shufflenet_unit_pallas.1} parent=11 // pred_fallthru
        _
      // Predicated region
      $region25: #{shufflenet_unit_pallas.1} parent=11 // pred_check
        %p237 = pneg %p124
      $region26: #{shufflenet_unit_pallas.1} parent=11 // pred_check_branch
        %239 = sbr.rel (%p237) target = $region28
      $region27: #{shufflenet_unit_pallas.1} parent=11 // pred_region
        _
      $region28: #{shufflenet_unit_pallas.1} parent=11 // pred_fallthru
        _
      // Predicated region
      $region29: #{shufflenet_unit_pallas.1} parent=11 // pred_check
        %p240 = pneg %p145
      $region30: #{shufflenet_unit_pallas.1} parent=11 // pred_check_branch
        %242 = sbr.rel (%p240) target = $region32
      $region31: #{shufflenet_unit_pallas.1} parent=11 // pred_region
        _
      $region32: #{shufflenet_unit_pallas.1} parent=11 // pred_fallthru
        _
      // Predicated region
      $region33: #{shufflenet_unit_pallas.1} parent=11 // pred_check
        %p243 = pneg %p166
      $region34: #{shufflenet_unit_pallas.1} parent=11 // pred_check_branch
        %245 = sbr.rel (%p243) target = $region36
      $region35: #{shufflenet_unit_pallas.1} parent=11 // pred_region
        _
      $region36: #{shufflenet_unit_pallas.1} parent=11 // pred_fallthru
        _
      // Predicated region
      $region37: #{shufflenet_unit_pallas.1} parent=11 // pred_check
        %p246 = pneg %p187
      $region38: #{shufflenet_unit_pallas.1} parent=11 // pred_check_branch
        %248 = sbr.rel (%p246) target = $region40
      $region39: #{shufflenet_unit_pallas.1} parent=11 // pred_region
        _
      $region40: #{shufflenet_unit_pallas.1} parent=11 // pred_fallthru
        _
    $region12: #{shufflenet_unit_pallas.1} parent=5 // pred_fallthru
      _
    %p249 = scmp.lt.s32.totalorder %s14, 2
    // Predicated region
    $region41: #{shufflenet_unit_pallas.1} parent=5 // pred_check
      %p250 = pneg %p249
    $region42: #{shufflenet_unit_pallas.1} parent=5 // pred_check_branch
      %252 = sbr.rel (%p250) target = $region44
    $region43: #{shufflenet_unit_pallas.1} parent=5 // pred_region
      // Predicated region
      $region45: #{shufflenet_unit_pallas.1} parent=43 // pred_check
        %p253 = pneg %p34
      $region46: #{shufflenet_unit_pallas.1} parent=43 // pred_check_branch
        %255 = sbr.rel (%p253) target = $region48
      $region47: #{shufflenet_unit_pallas.1} parent=43 // pred_region
        %p256 = scmp.lt.s32.totalorder %s14, 1
        %s257 = scalar_select %p256, %s14, 1
        %s258 = smul.addr %s257, 5
        %s259 = smul.addr %s258, 8
        %s260 = scalar_lea.vmem %s0, %s259
      $region48: #{shufflenet_unit_pallas.1} parent=43 // pred_fallthru
        _
    $region44: #{shufflenet_unit_pallas.1} parent=5 // pred_fallthru
      _
    %p261 = scmp.le.s32.totalorder 1, %s14
    %p262 = scmp.lt.s32.totalorder %s14, 3
    %p263 = pnand %p261, %p262
    %p264 = pneg %p263
    // Predicated region
    $region49: #{shufflenet_unit_pallas.1} parent=5 // pred_check
      _
    $region50: #{shufflenet_unit_pallas.1} parent=5 // pred_check_branch
      %266 = sbr.rel (%p263) target = $region52
    $region51: #{shufflenet_unit_pallas.1} parent=5 // pred_region
      %s267 = ssub.s32 %s14, 1
      %p268 = scmp.lt.s32.totalorder %s19, 1
      %s269 = scalar_select %p268, %s19, 1
      %s270 = smul.addr %s269, 5
      %s271 = smul.addr %s270, 8
      %s272 = scalar_lea.vmem %s0, %s271
      %p273 = pneg %p40
      %p274 = pneg %p37
      %p275 = pneg %p61
      %p276 = pneg %p58
      %p277 = pneg %p82
      %p278 = pneg %p79
      %p279 = pneg %p103
      %p280 = pneg %p100
      %p281 = pneg %p124
      %p282 = pneg %p121
      %p283 = pneg %p145
      %p284 = pneg %p142
      %p285 = pneg %p166
      %p286 = pneg %p163
      %p287 = pneg %p187
      %p288 = pneg %p184
      %p289 = pneg %p213
      %p290 = pneg %p210
      %p291 = scmp.lt.s32.totalorder %s19, 1
      %s292 = scalar_select %p291, %s19, 1
      %s293 = smul.addr %s292, 6
      %s294 = smul.addr %s293, 8
      %s295 = scalar_lea.vmem %s8, %s294
      %p296 = scmp.lt.s32.totalorder %s19, 1
      %s297 = scalar_select %p296, %s19, 1
      %s298 = smul.addr %s297, 5
      %s299 = smul.addr %s298, 8
      %s300 = scalar_lea.vmem %s0, %s299
      %p301 = scmp.lt.s32.totalorder %s19, 1
      %s302 = scalar_select %p301, %s19, 1
      %s303 = smul.addr %s302, 6
      %s304 = smul.addr %s303, 8
      %s305 = scalar_lea.vmem %s8, %s304
      %v306 = vld [vmem:[%s300] sm:$0xff]
      %v307 = vld [vmem:[%s300 + $0x8] sm:$0xff]
      %v308 = vld [vmem:[%s300 + $0x10] sm:$0xff]
      %v309 = vld [vmem:[%s300 + $0x18] sm:$0xff]
      %v310 = vld [vmem:[%s300 + $0x20] sm:$0xff]
      %v311 = vld [vmem:[%s2] sm:$0xf]
      %v312 = vld [vmem:[%s3] sm:$0xf]
      %314 = vset.pattern.permute.xlu0 0
      %315 = vperm.xlu0 %314, %v312
      %v316 = vpop.permute.xlu0 %315
      %vm318 = vcmask 64512
      %v320 = vsel %vm318, %v311, 0
      %322 = vmatprep.subr.mxu0 %v307
      %323 = vmatpush1.msra.mxu0 %v306
      %324 = vmatprep.subr.mxu0 0.0
      %325 = vmatpush1.msra.mxu0 0.0
      %326 = vmatprep.subr.mxu0 0.0
      %327 = vmatpush1.msra.mxu0 0.0
      %328 = vmatprep.subr.mxu0 0.0
      %329 = vmatpush1.msra.mxu0 0.0
      %330 = vmatprep.subr.mxu0 0.0
      %331 = vmatpush1.msra.mxu0 0.0
      %332 = vmatprep.subr.mxu0 0.0
      %333 = vmatpush1.msra.mxu0 0.0
      %334 = vmatprep.subr.mxu0 0.0
      %335 = vmatpush1.msra.mxu0 0.0
      %336 = vmatprep.subr.mxu0 0.0
      %337 = vmatpush1.msra.mxu0 0.0
      %338 = vmatprep.subr.mxu0 0.0
      %339 = vmatpush1.msra.mxu0 0.0
      %340 = vmatprep.subr.mxu0 0.0
      %341 = vmatpush1.msra.mxu0 0.0
      %342 = vmatprep.subr.mxu0 0.0
      %343 = vmatpush1.msra.mxu0 0.0
      %344 = vmatprep.subr.mxu0 0.0
      %345 = vmatpush1.msra.mxu0 0.0
      %346 = vmatprep.subr.mxu0 0.0
      %347 = vmatpush1.msra.mxu0 0.0
      %348 = vmatprep.subr.mxu0 0.0
      %349 = vmatpush1.msra.mxu0 0.0
      %350 = vmatprep.subr.mxu0 0.0
      %351 = vmatpush1.msra.mxu0 0.0
      %352 = vmatprep.subr.mxu0 0.0
      %353 = vmatpush1.msra.mxu0 0.0
      %354 = vmatprep.subr.mxu0 0.0
      %355 = vmatpush1.msra.mxu0 0.0
      %356 = vmatprep.subr.mxu0 0.0
      %357 = vmatpush1.msra.mxu0 0.0
      %358 = vmatprep.subr.mxu0 0.0
      %359 = vmatpush1.msra.mxu0 0.0
      %360 = vmatprep.subr.mxu0 0.0
      %361 = vmatpush1.msra.mxu0 0.0
      %362 = vmatprep.subr.mxu0 0.0
      %363 = vmatpush1.msra.mxu0 0.0
      %364 = vmatprep.subr.mxu0 0.0
      %365 = vmatpush1.msra.mxu0 0.0
      %366 = vmatprep.subr.mxu0 0.0
      %367 = vmatpush1.msra.mxu0 0.0
      %368 = vmatprep.subr.mxu0 0.0
      %369 = vmatpush1.msra.mxu0 0.0
      %370 = vmatprep.subr.mxu0 0.0
      %371 = vmatpush1.msra.mxu0 0.0
      %372 = vmatprep.subr.mxu0 0.0
      %373 = vmatpush1.msra.mxu0 0.0
      %374 = vmatprep.subr.mxu0 0.0
      %375 = vmatpush1.msra.mxu0 0.0
      %376 = vmatprep.subr.mxu0 0.0
      %377 = vmatpush1.msra.mxu0 0.0
      %378 = vmatprep.subr.mxu0 0.0
      %379 = vmatpush1.msra.mxu0 0.0
      %380 = vmatprep.subr.mxu0 0.0
      %381 = vmatpush1.msra.mxu0 0.0
      %382 = vmatprep.subr.mxu0 0.0
      %383 = vmatpush1.msra.mxu0 0.0
      %384 = vmatprep.subr.mxu0 0.0
      %385 = vmatpush1.msra.mxu0 0.0
      %386 = vmatprep.mubr.f32.mxu0 0.0
      %387 = vmatmul.mubr.f32.gmra.mrb[0].mxu0 %v320
      %v388 = vpop.f32.mrb[0].mxu0
      %v389 = vadd.f32 %v316, %v388
      %v390 = vpop.f32.mrb[0].mxu0
      %v391 = vadd.f32 %v316, %v390
      %392 = vdwg.mxu0
      %393 = vmatprep.subr.mxu0 %v309
      %394 = vmatpush1.msra.mxu0 %v308
      %395 = vmatprep.subr.mxu0 0.0
      %396 = vmatpush1.msra.mxu0 0.0
      %397 = vmatprep.subr.mxu0 0.0
      %398 = vmatpush1.msra.mxu0 0.0
      %399 = vmatprep.subr.mxu0 0.0
      %400 = vmatpush1.msra.mxu0 0.0
      %401 = vmatprep.subr.mxu0 0.0
      %402 = vmatpush1.msra.mxu0 0.0
      %403 = vmatprep.subr.mxu0 0.0
      %404 = vmatpush1.msra.mxu0 0.0
      %405 = vmatprep.subr.mxu0 0.0
      %406 = vmatpush1.msra.mxu0 0.0
      %407 = vmatprep.subr.mxu0 0.0
      %408 = vmatpush1.msra.mxu0 0.0
      %409 = vmatprep.subr.mxu0 0.0
      %410 = vmatpush1.msra.mxu0 0.0
      %411 = vmatprep.subr.mxu0 0.0
      %412 = vmatpush1.msra.mxu0 0.0
      %413 = vmatprep.subr.mxu0 0.0
      %414 = vmatpush1.msra.mxu0 0.0
      %415 = vmatprep.subr.mxu0 0.0
      %416 = vmatpush1.msra.mxu0 0.0
      %417 = vmatprep.subr.mxu0 0.0
      %418 = vmatpush1.msra.mxu0 0.0
      %419 = vmatprep.subr.mxu0 0.0
      %420 = vmatpush1.msra.mxu0 0.0
      %421 = vmatprep.subr.mxu0 0.0
      %422 = vmatpush1.msra.mxu0 0.0
      %423 = vmatprep.subr.mxu0 0.0
      %424 = vmatpush1.msra.mxu0 0.0
      %425 = vmatprep.subr.mxu0 0.0
      %426 = vmatpush1.msra.mxu0 0.0
      %427 = vmatprep.subr.mxu0 0.0
      %428 = vmatpush1.msra.mxu0 0.0
      %429 = vmatprep.subr.mxu0 0.0
      %430 = vmatpush1.msra.mxu0 0.0
      %431 = vmatprep.subr.mxu0 0.0
      %432 = vmatpush1.msra.mxu0 0.0
      %433 = vmatprep.subr.mxu0 0.0
      %434 = vmatpush1.msra.mxu0 0.0
      %435 = vmatprep.subr.mxu0 0.0
      %436 = vmatpush1.msra.mxu0 0.0
      %437 = vmatprep.subr.mxu0 0.0
      %438 = vmatpush1.msra.mxu0 0.0
      %439 = vmatprep.subr.mxu0 0.0
      %440 = vmatpush1.msra.mxu0 0.0
      %441 = vmatprep.subr.mxu0 0.0
      %442 = vmatpush1.msra.mxu0 0.0
      %443 = vmatprep.subr.mxu0 0.0
      %444 = vmatpush1.msra.mxu0 0.0
      %445 = vmatprep.subr.mxu0 0.0
      %446 = vmatpush1.msra.mxu0 0.0
      %447 = vmatprep.subr.mxu0 0.0
      %448 = vmatpush1.msra.mxu0 0.0
      %449 = vmatprep.subr.mxu0 0.0
      %450 = vmatpush1.msra.mxu0 0.0
      %451 = vmatprep.subr.mxu0 0.0
      %452 = vmatpush1.msra.mxu0 0.0
      %453 = vmatprep.subr.mxu0 0.0
      %454 = vmatpush1.msra.mxu0 0.0
      %455 = vmatprep.subr.mxu0 0.0
      %456 = vmatpush1.msra.mxu0 0.0
      %457 = vmatprep.mubr.f32.mxu0 0.0
      %458 = vmatmul.mubr.f32.gmra.mrb[0].mxu0 %v320
      %v459 = vpop.f32.mrb[0].mxu0
      %v460 = vadd.f32 %v316, %v459
      %v461 = vpop.f32.mrb[0].mxu0
      %v462 = vadd.f32 %v316, %v461
      %463 = vdwg.mxu0
      %464 = vmatprep.subr.mxu0 0.0
      %465 = vmatpush1.msra.mxu0 %v310
      %466 = vmatprep.subr.mxu0 0.0
      %467 = vmatpush1.msra.mxu0 0.0
      %468 = vmatprep.subr.mxu0 0.0
      %469 = vmatpush1.msra.mxu0 0.0
      %470 = vmatprep.subr.mxu0 0.0
      %471 = vmatpush1.msra.mxu0 0.0
      %472 = vmatprep.subr.mxu0 0.0
      %473 = vmatpush1.msra.mxu0 0.0
      %474 = vmatprep.subr.mxu0 0.0
      %475 = vmatpush1.msra.mxu0 0.0
      %476 = vmatprep.subr.mxu0 0.0
      %477 = vmatpush1.msra.mxu0 0.0
      %478 = vmatprep.subr.mxu0 0.0
      %479 = vmatpush1.msra.mxu0 0.0
      %480 = vmatprep.subr.mxu0 0.0
      %481 = vmatpush1.msra.mxu0 0.0
      %482 = vmatprep.subr.mxu0 0.0
      %483 = vmatpush1.msra.mxu0 0.0
      %484 = vmatprep.subr.mxu0 0.0
      %485 = vmatpush1.msra.mxu0 0.0
      %486 = vmatprep.subr.mxu0 0.0
      %487 = vmatpush1.msra.mxu0 0.0
      %488 = vmatprep.subr.mxu0 0.0
      %489 = vmatpush1.msra.mxu0 0.0
      %490 = vmatprep.subr.mxu0 0.0
      %491 = vmatpush1.msra.mxu0 0.0
      %492 = vmatprep.subr.mxu0 0.0
      %493 = vmatpush1.msra.mxu0 0.0
      %494 = vmatprep.subr.mxu0 0.0
      %495 = vmatpush1.msra.mxu0 0.0
      %496 = vmatprep.subr.mxu0 0.0
      %497 = vmatpush1.msra.mxu0 0.0
      %498 = vmatprep.subr.mxu0 0.0
      %499 = vmatpush1.msra.mxu0 0.0
      %500 = vmatprep.subr.mxu0 0.0
      %501 = vmatpush1.msra.mxu0 0.0
      %502 = vmatprep.subr.mxu0 0.0
      %503 = vmatpush1.msra.mxu0 0.0
      %504 = vmatprep.subr.mxu0 0.0
      %505 = vmatpush1.msra.mxu0 0.0
      %506 = vmatprep.subr.mxu0 0.0
      %507 = vmatpush1.msra.mxu0 0.0
      %508 = vmatprep.subr.mxu0 0.0
      %509 = vmatpush1.msra.mxu0 0.0
      %510 = vmatprep.subr.mxu0 0.0
      %511 = vmatpush1.msra.mxu0 0.0
      %512 = vmatprep.subr.mxu0 0.0
      %513 = vmatpush1.msra.mxu0 0.0
      %514 = vmatprep.subr.mxu0 0.0
      %515 = vmatpush1.msra.mxu0 0.0
      %516 = vmatprep.subr.mxu0 0.0
      %517 = vmatpush1.msra.mxu0 0.0
      %518 = vmatprep.subr.mxu0 0.0
      %519 = vmatpush1.msra.mxu0 0.0
      %520 = vmatprep.subr.mxu0 0.0
      %521 = vmatpush1.msra.mxu0 0.0
      %522 = vmatprep.subr.mxu0 0.0
      %523 = vmatpush1.msra.mxu0 0.0
      %524 = vmatprep.subr.mxu0 0.0
      %525 = vmatpush1.msra.mxu0 0.0
      %526 = vmatprep.subr.mxu0 0.0
      %527 = vmatpush1.msra.mxu0 0.0
      %528 = vmatprep.mubr.f32.mxu0 0.0
      %529 = vmatmul.mubr.f32.gmra.mrb[0].mxu0 %v320
      %v530 = vpop.f32.mrb[0].mxu0
      %v531 = vadd.f32 %v316, %v530
      %v532 = vpop.f32.mrb[0].mxu0
      %533 = vdwg.mxu0
      %v534 = vmax.f32 %v389, 0.0
      %v535 = vmax.f32 %v391, 0.0
      %v536 = vmax.f32 %v460, 0.0
      %v537 = vmax.f32 %v462, 0.0
      %v538 = vmax.f32 %v531, 0.0
      %v539 = vld [vmem:[%s1] sm:$0x1f]
      %v541 = vlaneseq
      %v542 = vshrl.u32 %v541, 7
      %v543 = vsub.s32 0, %v542
      %v544 = vrot.slane %v539, %v543
      %v545 = vlaneseq
      %v546 = vshrl.u32 %v545, 7
      %v547 = vsub.s32 1, %v546
      %v548 = vrot.slane %v539, %v547
      %v549 = vlaneseq
      %v550 = vshrl.u32 %v549, 7
      %v551 = vsub.s32 2, %v550
      %v552 = vrot.slane %v539, %v551
      %v553 = vlaneseq
      %v554 = vshrl.u32 %v553, 7
      %v555 = vsub.s32 3, %v554
      %v556 = vrot.slane %v539, %v555
      %v557 = vlaneseq
      %v558 = vshrl.u32 %v557, 7
      %v559 = vsub.s32 4, %v558
      %v560 = vrot.slane %v539, %v559
      %v566 = vmul.f32 %v534, %v544
      %v567 = vmul.f32 %v535, %v548
      %v568 = vmul.f32 %v536, %v552
      %v569 = vmul.f32 %v537, %v556
      %v570 = vmul.f32 %v538, %v560
      %v571 = vld [vmem:[%s4] sm:$0xf]
      %s572 = scalar_lea.vmem %s4, 4
      %v573 = vld [vmem:[%s572] sm:$0xf]
      %578 = vrot.lane.b32.xlu0 %v566, 18
      %v579 = vpop.permute.xlu0 %578
      %580 = vrot.lane.b32.xlu0 %v567, 18
      %v581 = vpop.permute.xlu0 %580
      %582 = vrot.lane.b32.xlu0 %v568, 18
      %v583 = vpop.permute.xlu0 %582
      %584 = vrot.lane.b32.xlu0 %v569, 18
      %v585 = vpop.permute.xlu0 %584
      %vm586 = vcmask 146432
      %v587 = vsel %vm586, %v579, %v581
      %v588 = vsel %vm586, %v581, %v583
      %v589 = vsel %vm586, %v583, %v585
      %vm590 = vcmask 31744
      %v592 = vsel %vm590, %v573, 0
      %vm594 = vcmask 1043456
      %v595 = vsel %vm594, %v587, 0
      %v597 = vsel %vm594, %v588, 0
      %v599 = vsel %vm594, %v589, 0
      %601 = vmatprep.subr.mxu0 %v597
      %602 = vmatpush1.msra.mxu0 %v595
      %603 = vmatprep.subr.mxu0 0.0
      %604 = vmatpush1.msra.mxu0 0.0
      %605 = vmatprep.subr.mxu0 0.0
      %606 = vmatpush1.msra.mxu0 0.0
      %607 = vmatprep.subr.mxu0 0.0
      %608 = vmatpush1.msra.mxu0 0.0
      %609 = vmatprep.subr.mxu0 0.0
      %610 = vmatpush1.msra.mxu0 0.0
      %611 = vmatprep.subr.mxu0 0.0
      %612 = vmatpush1.msra.mxu0 0.0
      %613 = vmatprep.subr.mxu0 0.0
      %614 = vmatpush1.msra.mxu0 0.0
      %615 = vmatprep.subr.mxu0 0.0
      %616 = vmatpush1.msra.mxu0 0.0
      %617 = vmatprep.subr.mxu0 0.0
      %618 = vmatpush1.msra.mxu0 0.0
      %619 = vmatprep.subr.mxu0 0.0
      %620 = vmatpush1.msra.mxu0 0.0
      %621 = vmatprep.subr.mxu0 0.0
      %622 = vmatpush1.msra.mxu0 0.0
      %623 = vmatprep.subr.mxu0 0.0
      %624 = vmatpush1.msra.mxu0 0.0
      %625 = vmatprep.subr.mxu0 0.0
      %626 = vmatpush1.msra.mxu0 0.0
      %627 = vmatprep.subr.mxu0 0.0
      %628 = vmatpush1.msra.mxu0 0.0
      %629 = vmatprep.subr.mxu0 0.0
      %630 = vmatpush1.msra.mxu0 0.0
      %631 = vmatprep.subr.mxu0 0.0
      %632 = vmatpush1.msra.mxu0 0.0
      %633 = vmatprep.subr.mxu0 0.0
      %634 = vmatpush1.msra.mxu0 0.0
      %635 = vmatprep.subr.mxu0 0.0
      %636 = vmatpush1.msra.mxu0 0.0
      %637 = vmatprep.subr.mxu0 0.0
      %638 = vmatpush1.msra.mxu0 0.0
      %639 = vmatprep.subr.mxu0 0.0
      %640 = vmatpush1.msra.mxu0 0.0
      %641 = vmatprep.subr.mxu0 0.0
      %642 = vmatpush1.msra.mxu0 0.0
      %643 = vmatprep.subr.mxu0 0.0
      %644 = vmatpush1.msra.mxu0 0.0
      %645 = vmatprep.subr.mxu0 0.0
      %646 = vmatpush1.msra.mxu0 0.0
      %647 = vmatprep.subr.mxu0 0.0
      %648 = vmatpush1.msra.mxu0 0.0
      %649 = vmatprep.subr.mxu0 0.0
      %650 = vmatpush1.msra.mxu0 0.0
      %651 = vmatprep.subr.mxu0 0.0
      %652 = vmatpush1.msra.mxu0 0.0
      %653 = vmatprep.subr.mxu0 0.0
      %654 = vmatpush1.msra.mxu0 0.0
      %655 = vmatprep.subr.mxu0 0.0
      %656 = vmatpush1.msra.mxu0 0.0
      %657 = vmatprep.subr.mxu0 0.0
      %658 = vmatpush1.msra.mxu0 0.0
      %659 = vmatprep.subr.mxu0 0.0
      %660 = vmatpush1.msra.mxu0 0.0
      %661 = vmatprep.subr.mxu0 0.0
      %662 = vmatpush1.msra.mxu0 0.0
      %663 = vmatprep.subr.mxu0 0.0
      %664 = vmatpush1.msra.mxu0 0.0
      %665 = vmatprep.mubr.f32.mxu0 0.0
      %666 = vmatmul.mubr.f32.gmra.mrb[0].mxu0 %v592
      %v667 = vpop.f32.mrb[0].mxu0
      %v668 = vadd.f32 0.0, %v667
      %v669 = vpop.f32.mrb[0].mxu0
      %v670 = vadd.f32 0.0, %v669
      %671 = vdwg.mxu0
      %672 = vmatprep.subr.mxu0 0.0
      %673 = vmatpush1.msra.mxu0 %v599
      %674 = vmatprep.subr.mxu0 0.0
      %675 = vmatpush1.msra.mxu0 0.0
      %676 = vmatprep.subr.mxu0 0.0
      %677 = vmatpush1.msra.mxu0 0.0
      %678 = vmatprep.subr.mxu0 0.0
      %679 = vmatpush1.msra.mxu0 0.0
      %680 = vmatprep.subr.mxu0 0.0
      %681 = vmatpush1.msra.mxu0 0.0
      %682 = vmatprep.subr.mxu0 0.0
      %683 = vmatpush1.msra.mxu0 0.0
      %684 = vmatprep.subr.mxu0 0.0
      %685 = vmatpush1.msra.mxu0 0.0
      %686 = vmatprep.subr.mxu0 0.0
      %687 = vmatpush1.msra.mxu0 0.0
      %688 = vmatprep.subr.mxu0 0.0
      %689 = vmatpush1.msra.mxu0 0.0
      %690 = vmatprep.subr.mxu0 0.0
      %691 = vmatpush1.msra.mxu0 0.0
      %692 = vmatprep.subr.mxu0 0.0
      %693 = vmatpush1.msra.mxu0 0.0
      %694 = vmatprep.subr.mxu0 0.0
      %695 = vmatpush1.msra.mxu0 0.0
      %696 = vmatprep.subr.mxu0 0.0
      %697 = vmatpush1.msra.mxu0 0.0
      %698 = vmatprep.subr.mxu0 0.0
      %699 = vmatpush1.msra.mxu0 0.0
      %700 = vmatprep.subr.mxu0 0.0
      %701 = vmatpush1.msra.mxu0 0.0
      %702 = vmatprep.subr.mxu0 0.0
      %703 = vmatpush1.msra.mxu0 0.0
      %704 = vmatprep.subr.mxu0 0.0
      %705 = vmatpush1.msra.mxu0 0.0
      %706 = vmatprep.subr.mxu0 0.0
      %707 = vmatpush1.msra.mxu0 0.0
      %708 = vmatprep.subr.mxu0 0.0
      %709 = vmatpush1.msra.mxu0 0.0
      %710 = vmatprep.subr.mxu0 0.0
      %711 = vmatpush1.msra.mxu0 0.0
      %712 = vmatprep.subr.mxu0 0.0
      %713 = vmatpush1.msra.mxu0 0.0
      %714 = vmatprep.subr.mxu0 0.0
      %715 = vmatpush1.msra.mxu0 0.0
      %716 = vmatprep.subr.mxu0 0.0
      %717 = vmatpush1.msra.mxu0 0.0
      %718 = vmatprep.subr.mxu0 0.0
      %719 = vmatpush1.msra.mxu0 0.0
      %720 = vmatprep.subr.mxu0 0.0
      %721 = vmatpush1.msra.mxu0 0.0
      %722 = vmatprep.subr.mxu0 0.0
      %723 = vmatpush1.msra.mxu0 0.0
      %724 = vmatprep.subr.mxu0 0.0
      %725 = vmatpush1.msra.mxu0 0.0
      %726 = vmatprep.subr.mxu0 0.0
      %727 = vmatpush1.msra.mxu0 0.0
      %728 = vmatprep.subr.mxu0 0.0
      %729 = vmatpush1.msra.mxu0 0.0
      %730 = vmatprep.subr.mxu0 0.0
      %731 = vmatpush1.msra.mxu0 0.0
      %732 = vmatprep.subr.mxu0 0.0
      %733 = vmatpush1.msra.mxu0 0.0
      %734 = vmatprep.subr.mxu0 0.0
      %735 = vmatpush1.msra.mxu0 0.0
      %736 = vmatprep.mubr.f32.mxu0 0.0
      %737 = vmatmul.mubr.f32.gmra.mrb[0].mxu0 %v592
      %v738 = vpop.f32.mrb[0].mxu0
      %v739 = vadd.f32 0.0, %v738
      %v740 = vpop.f32.mrb[0].mxu0
      %741 = vdwg.mxu0
      %742 = vrot.lane.b32.xlu0 %v566, 19
      %v743 = vpop.permute.xlu0 %742
      %744 = vrot.lane.b32.xlu0 %v567, 19
      %v745 = vpop.permute.xlu0 %744
      %746 = vrot.lane.b32.xlu0 %v568, 19
      %v747 = vpop.permute.xlu0 %746
      %748 = vrot.lane.b32.xlu0 %v569, 19
      %v749 = vpop.permute.xlu0 %748
      %vm750 = vcmask 154624
      %v751 = vsel %vm750, %v743, %v745
      %v752 = vsel %vm750, %v745, %v747
      %v753 = vsel %vm750, %v747, %v749
      %v755 = vsel %vm590, %v571, 0
      %v757 = vsel %vm594, %v751, 0
      %v759 = vsel %vm594, %v752, 0
      %v761 = vsel %vm594, %v753, 0
      %763 = vmatprep.subr.mxu0 %v759
      %764 = vmatpush1.msra.mxu0 %v757
      %765 = vmatprep.subr.mxu0 0.0
      %766 = vmatpush1.msra.mxu0 0.0
      %767 = vmatprep.subr.mxu0 0.0
      %768 = vmatpush1.msra.mxu0 0.0
      %769 = vmatprep.subr.mxu0 0.0
      %770 = vmatpush1.msra.mxu0 0.0
      %771 = vmatprep.subr.mxu0 0.0
      %772 = vmatpush1.msra.mxu0 0.0
      %773 = vmatprep.subr.mxu0 0.0
      %774 = vmatpush1.msra.mxu0 0.0
      %775 = vmatprep.subr.mxu0 0.0
      %776 = vmatpush1.msra.mxu0 0.0
      %777 = vmatprep.subr.mxu0 0.0
      %778 = vmatpush1.msra.mxu0 0.0
      %779 = vmatprep.subr.mxu0 0.0
      %780 = vmatpush1.msra.mxu0 0.0
      %781 = vmatprep.subr.mxu0 0.0
      %782 = vmatpush1.msra.mxu0 0.0
      %783 = vmatprep.subr.mxu0 0.0
      %784 = vmatpush1.msra.mxu0 0.0
      %785 = vmatprep.subr.mxu0 0.0
      %786 = vmatpush1.msra.mxu0 0.0
      %787 = vmatprep.subr.mxu0 0.0
      %788 = vmatpush1.msra.mxu0 0.0
      %789 = vmatprep.subr.mxu0 0.0
      %790 = vmatpush1.msra.mxu0 0.0
      %791 = vmatprep.subr.mxu0 0.0
      %792 = vmatpush1.msra.mxu0 0.0
      %793 = vmatprep.subr.mxu0 0.0
      %794 = vmatpush1.msra.mxu0 0.0
      %795 = vmatprep.subr.mxu0 0.0
      %796 = vmatpush1.msra.mxu0 0.0
      %797 = vmatprep.subr.mxu0 0.0
      %798 = vmatpush1.msra.mxu0 0.0
      %799 = vmatprep.subr.mxu0 0.0
      %800 = vmatpush1.msra.mxu0 0.0
      %801 = vmatprep.subr.mxu0 0.0
      %802 = vmatpush1.msra.mxu0 0.0
      %803 = vmatprep.subr.mxu0 0.0
      %804 = vmatpush1.msra.mxu0 0.0
      %805 = vmatprep.subr.mxu0 0.0
      %806 = vmatpush1.msra.mxu0 0.0
      %807 = vmatprep.subr.mxu0 0.0
      %808 = vmatpush1.msra.mxu0 0.0
      %809 = vmatprep.subr.mxu0 0.0
      %810 = vmatpush1.msra.mxu0 0.0
      %811 = vmatprep.subr.mxu0 0.0
      %812 = vmatpush1.msra.mxu0 0.0
      %813 = vmatprep.subr.mxu0 0.0
      %814 = vmatpush1.msra.mxu0 0.0
      %815 = vmatprep.subr.mxu0 0.0
      %816 = vmatpush1.msra.mxu0 0.0
      %817 = vmatprep.subr.mxu0 0.0
      %818 = vmatpush1.msra.mxu0 0.0
      %819 = vmatprep.subr.mxu0 0.0
      %820 = vmatpush1.msra.mxu0 0.0
      %821 = vmatprep.subr.mxu0 0.0
      %822 = vmatpush1.msra.mxu0 0.0
      %823 = vmatprep.subr.mxu0 0.0
      %824 = vmatpush1.msra.mxu0 0.0
      %825 = vmatprep.subr.mxu0 0.0
      %826 = vmatpush1.msra.mxu0 0.0
      %827 = vmatprep.mubr.f32.mxu0 0.0
      %828 = vmatmul.mubr.f32.gmra.mrb[0].mxu0 %v755
      %v829 = vpop.f32.mrb[0].mxu0
      %v830 = vadd.f32 %v668, %v829
      %v831 = vpop.f32.mrb[0].mxu0
      %v832 = vadd.f32 %v670, %v831
      %833 = vdwg.mxu0
      %834 = vmatprep.subr.mxu0 0.0
      %835 = vmatpush1.msra.mxu0 %v761
      %836 = vmatprep.subr.mxu0 0.0
      %837 = vmatpush1.msra.mxu0 0.0
      %838 = vmatprep.subr.mxu0 0.0
      %839 = vmatpush1.msra.mxu0 0.0
      %840 = vmatprep.subr.mxu0 0.0
      %841 = vmatpush1.msra.mxu0 0.0
      %842 = vmatprep.subr.mxu0 0.0
      %843 = vmatpush1.msra.mxu0 0.0
      %844 = vmatprep.subr.mxu0 0.0
      %845 = vmatpush1.msra.mxu0 0.0
      %846 = vmatprep.subr.mxu0 0.0
      %847 = vmatpush1.msra.mxu0 0.0
      %848 = vmatprep.subr.mxu0 0.0
      %849 = vmatpush1.msra.mxu0 0.0
      %850 = vmatprep.subr.mxu0 0.0
      %851 = vmatpush1.msra.mxu0 0.0
      %852 = vmatprep.subr.mxu0 0.0
      %853 = vmatpush1.msra.mxu0 0.0
      %854 = vmatprep.subr.mxu0 0.0
      %855 = vmatpush1.msra.mxu0 0.0
      %856 = vmatprep.subr.mxu0 0.0
      %857 = vmatpush1.msra.mxu0 0.0
      %858 = vmatprep.subr.mxu0 0.0
      %859 = vmatpush1.msra.mxu0 0.0
      %860 = vmatprep.subr.mxu0 0.0
      %861 = vmatpush1.msra.mxu0 0.0
      %862 = vmatprep.subr.mxu0 0.0
      %863 = vmatpush1.msra.mxu0 0.0
      %864 = vmatprep.subr.mxu0 0.0
      %865 = vmatpush1.msra.mxu0 0.0
      %866 = vmatprep.subr.mxu0 0.0
      %867 = vmatpush1.msra.mxu0 0.0
      %868 = vmatprep.subr.mxu0 0.0
      %869 = vmatpush1.msra.mxu0 0.0
      %870 = vmatprep.subr.mxu0 0.0
      %871 = vmatpush1.msra.mxu0 0.0
      %872 = vmatprep.subr.mxu0 0.0
      %873 = vmatpush1.msra.mxu0 0.0
      %874 = vmatprep.subr.mxu0 0.0
      %875 = vmatpush1.msra.mxu0 0.0
      %876 = vmatprep.subr.mxu0 0.0
      %877 = vmatpush1.msra.mxu0 0.0
      %878 = vmatprep.subr.mxu0 0.0
      %879 = vmatpush1.msra.mxu0 0.0
      %880 = vmatprep.subr.mxu0 0.0
      %881 = vmatpush1.msra.mxu0 0.0
      %882 = vmatprep.subr.mxu0 0.0
      %883 = vmatpush1.msra.mxu0 0.0
      %884 = vmatprep.subr.mxu0 0.0
      %885 = vmatpush1.msra.mxu0 0.0
      %886 = vmatprep.subr.mxu0 0.0
      %887 = vmatpush1.msra.mxu0 0.0
      %888 = vmatprep.subr.mxu0 0.0
      %889 = vmatpush1.msra.mxu0 0.0
      %890 = vmatprep.subr.mxu0 0.0
      %891 = vmatpush1.msra.mxu0 0.0
      %892 = vmatprep.subr.mxu0 0.0
      %893 = vmatpush1.msra.mxu0 0.0
      %894 = vmatprep.subr.mxu0 0.0
      %895 = vmatpush1.msra.mxu0 0.0
      %896 = vmatprep.subr.mxu0 0.0
      %897 = vmatpush1.msra.mxu0 0.0
      %898 = vmatprep.mubr.f32.mxu0 0.0
      %899 = vmatmul.mubr.f32.gmra.mrb[0].mxu0 %v755
      %v900 = vpop.f32.mrb[0].mxu0
      %v901 = vadd.f32 %v739, %v900
      %v902 = vpop.f32.mrb[0].mxu0
      %903 = vdwg.mxu0
      %s904 = scalar_lea.vmem %s4, 8
      %v905 = vld [vmem:[%s904] sm:$0xf]
      %906 = vrot.lane.b32.xlu0 %v566, 17
      %v907 = vpop.permute.xlu0 %906
      %908 = vrot.lane.b32.xlu0 %v567, 17
      %v909 = vpop.permute.xlu0 %908
      %910 = vrot.lane.b32.xlu0 %v568, 17
      %v911 = vpop.permute.xlu0 %910
      %912 = vrot.lane.b32.xlu0 %v569, 17
      %v913 = vpop.permute.xlu0 %912
      %vm914 = vcmask 138240
      %v915 = vsel %vm914, %v907, %v909
      %v916 = vsel %vm914, %v909, %v911
      %v917 = vsel %vm914, %v911, %v913
      %v919 = vsel %vm590, %v905, 0
      %v921 = vsel %vm594, %v915, 0
      %v923 = vsel %vm594, %v916, 0
      %v925 = vsel %vm594, %v917, 0
      %927 = vmatprep.subr.mxu0 %v923
      %928 = vmatpush1.msra.mxu0 %v921
      %929 = vmatprep.subr.mxu0 0.0
      %930 = vmatpush1.msra.mxu0 0.0
      %931 = vmatprep.subr.mxu0 0.0
      %932 = vmatpush1.msra.mxu0 0.0
      %933 = vmatprep.subr.mxu0 0.0
      %934 = vmatpush1.msra.mxu0 0.0
      %935 = vmatprep.subr.mxu0 0.0
      %936 = vmatpush1.msra.mxu0 0.0
      %937 = vmatprep.subr.mxu0 0.0
      %938 = vmatpush1.msra.mxu0 0.0
      %939 = vmatprep.subr.mxu0 0.0
      %940 = vmatpush1.msra.mxu0 0.0
      %941 = vmatprep.subr.mxu0 0.0
      %942 = vmatpush1.msra.mxu0 0.0
      %943 = vmatprep.subr.mxu0 0.0
      %944 = vmatpush1.msra.mxu0 0.0
      %945 = vmatprep.subr.mxu0 0.0
      %946 = vmatpush1.msra.mxu0 0.0
      %947 = vmatprep.subr.mxu0 0.0
      %948 = vmatpush1.msra.mxu0 0.0
      %949 = vmatprep.subr.mxu0 0.0
      %950 = vmatpush1.msra.mxu0 0.0
      %951 = vmatprep.subr.mxu0 0.0
      %952 = vmatpush1.msra.mxu0 0.0
      %953 = vmatprep.subr.mxu0 0.0
      %954 = vmatpush1.msra.mxu0 0.0
      %955 = vmatprep.subr.mxu0 0.0
      %956 = vmatpush1.msra.mxu0 0.0
      %957 = vmatprep.subr.mxu0 0.0
      %958 = vmatpush1.msra.mxu0 0.0
      %959 = vmatprep.subr.mxu0 0.0
      %960 = vmatpush1.msra.mxu0 0.0
      %961 = vmatprep.subr.mxu0 0.0
      %962 = vmatpush1.msra.mxu0 0.0
      %963 = vmatprep.subr.mxu0 0.0
      %964 = vmatpush1.msra.mxu0 0.0
      %965 = vmatprep.subr.mxu0 0.0
      %966 = vmatpush1.msra.mxu0 0.0
      %967 = vmatprep.subr.mxu0 0.0
      %968 = vmatpush1.msra.mxu0 0.0
      %969 = vmatprep.subr.mxu0 0.0
      %970 = vmatpush1.msra.mxu0 0.0
      %971 = vmatprep.subr.mxu0 0.0
      %972 = vmatpush1.msra.mxu0 0.0
      %973 = vmatprep.subr.mxu0 0.0
      %974 = vmatpush1.msra.mxu0 0.0
      %975 = vmatprep.subr.mxu0 0.0
      %976 = vmatpush1.msra.mxu0 0.0
      %977 = vmatprep.subr.mxu0 0.0
      %978 = vmatpush1.msra.mxu0 0.0
      %979 = vmatprep.subr.mxu0 0.0
      %980 = vmatpush1.msra.mxu0 0.0
      %981 = vmatprep.subr.mxu0 0.0
      %982 = vmatpush1.msra.mxu0 0.0
      %983 = vmatprep.subr.mxu0 0.0
      %984 = vmatpush1.msra.mxu0 0.0
      %985 = vmatprep.subr.mxu0 0.0
      %986 = vmatpush1.msra.mxu0 0.0
      %987 = vmatprep.subr.mxu0 0.0
      %988 = vmatpush1.msra.mxu0 0.0
      %989 = vmatprep.subr.mxu0 0.0
      %990 = vmatpush1.msra.mxu0 0.0
      %991 = vmatprep.mubr.f32.mxu0 0.0
      %992 = vmatmul.mubr.f32.gmra.mrb[0].mxu0 %v919
      %v993 = vpop.f32.mrb[0].mxu0
      %v994 = vadd.f32 0.0, %v993
      %v995 = vpop.f32.mrb[0].mxu0
      %v996 = vadd.f32 0.0, %v995
      %997 = vdwg.mxu0
      %998 = vmatprep.subr.mxu0 0.0
      %999 = vmatpush1.msra.mxu0 %v925
      %1000 = vmatprep.subr.mxu0 0.0
      %1001 = vmatpush1.msra.mxu0 0.0
      %1002 = vmatprep.subr.mxu0 0.0
      %1003 = vmatpush1.msra.mxu0 0.0
      %1004 = vmatprep.subr.mxu0 0.0
      %1005 = vmatpush1.msra.mxu0 0.0
      %1006 = vmatprep.subr.mxu0 0.0
      %1007 = vmatpush1.msra.mxu0 0.0
      %1008 = vmatprep.subr.mxu0 0.0
      %1009 = vmatpush1.msra.mxu0 0.0
      %1010 = vmatprep.subr.mxu0 0.0
      %1011 = vmatpush1.msra.mxu0 0.0
      %1012 = vmatprep.subr.mxu0 0.0
      %1013 = vmatpush1.msra.mxu0 0.0
      %1014 = vmatprep.subr.mxu0 0.0
      %1015 = vmatpush1.msra.mxu0 0.0
      %1016 = vmatprep.subr.mxu0 0.0
      %1017 = vmatpush1.msra.mxu0 0.0
      %1018 = vmatprep.subr.mxu0 0.0
      %1019 = vmatpush1.msra.mxu0 0.0
      %1020 = vmatprep.subr.mxu0 0.0
      %1021 = vmatpush1.msra.mxu0 0.0
      %1022 = vmatprep.subr.mxu0 0.0
      %1023 = vmatpush1.msra.mxu0 0.0
      %1024 = vmatprep.subr.mxu0 0.0
      %1025 = vmatpush1.msra.mxu0 0.0
      %1026 = vmatprep.subr.mxu0 0.0
      %1027 = vmatpush1.msra.mxu0 0.0
      %1028 = vmatprep.subr.mxu0 0.0
      %1029 = vmatpush1.msra.mxu0 0.0
      %1030 = vmatprep.subr.mxu0 0.0
      %1031 = vmatpush1.msra.mxu0 0.0
      %1032 = vmatprep.subr.mxu0 0.0
      %1033 = vmatpush1.msra.mxu0 0.0
      %1034 = vmatprep.subr.mxu0 0.0
      %1035 = vmatpush1.msra.mxu0 0.0
      %1036 = vmatprep.subr.mxu0 0.0
      %1037 = vmatpush1.msra.mxu0 0.0
      %1038 = vmatprep.subr.mxu0 0.0
      %1039 = vmatpush1.msra.mxu0 0.0
      %1040 = vmatprep.subr.mxu0 0.0
      %1041 = vmatpush1.msra.mxu0 0.0
      %1042 = vmatprep.subr.mxu0 0.0
      %1043 = vmatpush1.msra.mxu0 0.0
      %1044 = vmatprep.subr.mxu0 0.0
      %1045 = vmatpush1.msra.mxu0 0.0
      %1046 = vmatprep.subr.mxu0 0.0
      %1047 = vmatpush1.msra.mxu0 0.0
      %1048 = vmatprep.subr.mxu0 0.0
      %1049 = vmatpush1.msra.mxu0 0.0
      %1050 = vmatprep.subr.mxu0 0.0
      %1051 = vmatpush1.msra.mxu0 0.0
      %1052 = vmatprep.subr.mxu0 0.0
      %1053 = vmatpush1.msra.mxu0 0.0
      %1054 = vmatprep.subr.mxu0 0.0
      %1055 = vmatpush1.msra.mxu0 0.0
      %1056 = vmatprep.subr.mxu0 0.0
      %1057 = vmatpush1.msra.mxu0 0.0
      %1058 = vmatprep.subr.mxu0 0.0
      %1059 = vmatpush1.msra.mxu0 0.0
      %1060 = vmatprep.subr.mxu0 0.0
      %1061 = vmatpush1.msra.mxu0 0.0
      %1062 = vmatprep.mubr.f32.mxu0 0.0
      %1063 = vmatmul.mubr.f32.gmra.mrb[0].mxu0 %v919
      %v1064 = vpop.f32.mrb[0].mxu0
      %v1065 = vadd.f32 0.0, %v1064
      %v1066 = vpop.f32.mrb[0].mxu0
      %1067 = vdwg.mxu0
      %v1068 = vadd.f32 %v830, %v994
      %v1069 = vadd.f32 %v832, %v996
      %v1070 = vadd.f32 %v901, %v1065
      %s1071 = scalar_lea.vmem %s4, 12
      %v1072 = vld [vmem:[%s1071] sm:$0xf]
      %1073 = vrot.lane.b32.xlu0 %v566, 1
      %v1074 = vpop.permute.xlu0 %1073
      %1075 = vrot.lane.b32.xlu0 %v567, 1
      %v1076 = vpop.permute.xlu0 %1075
      %1077 = vrot.lane.b32.xlu0 %v568, 1
      %v1078 = vpop.permute.xlu0 %1077
      %1079 = vrot.lane.b32.xlu0 %v569, 1
      %v1080 = vpop.permute.xlu0 %1079
      %vm1081 = vcmask 7168
      %v1082 = vsel %vm1081, %v1074, %v1076
      %v1083 = vsel %vm1081, %v1076, %v1078
      %v1084 = vsel %vm1081, %v1078, %v1080
      %v1086 = vsel %vm590, %v1072, 0
      %v1088 = vsel %vm594, %v1082, 0
      %v1090 = vsel %vm594, %v1083, 0
      %v1092 = vsel %vm594, %v1084, 0
      %1094 = vmatprep.subr.mxu0 %v1090
      %1095 = vmatpush1.msra.mxu0 %v1088
      %1096 = vmatprep.subr.mxu0 0.0
      %1097 = vmatpush1.msra.mxu0 0.0
      %1098 = vmatprep.subr.mxu0 0.0
      %1099 = vmatpush1.msra.mxu0 0.0
      %1100 = vmatprep.subr.mxu0 0.0
      %1101 = vmatpush1.msra.mxu0 0.0
      %1102 = vmatprep.subr.mxu0 0.0
      %1103 = vmatpush1.msra.mxu0 0.0
      %1104 = vmatprep.subr.mxu0 0.0
      %1105 = vmatpush1.msra.mxu0 0.0
      %1106 = vmatprep.subr.mxu0 0.0
      %1107 = vmatpush1.msra.mxu0 0.0
      %1108 = vmatprep.subr.mxu0 0.0
      %1109 = vmatpush1.msra.mxu0 0.0
      %1110 = vmatprep.subr.mxu0 0.0
      %1111 = vmatpush1.msra.mxu0 0.0
      %1112 = vmatprep.subr.mxu0 0.0
      %1113 = vmatpush1.msra.mxu0 0.0
      %1114 = vmatprep.subr.mxu0 0.0
      %1115 = vmatpush1.msra.mxu0 0.0
      %1116 = vmatprep.subr.mxu0 0.0
      %1117 = vmatpush1.msra.mxu0 0.0
      %1118 = vmatprep.subr.mxu0 0.0
      %1119 = vmatpush1.msra.mxu0 0.0
      %1120 = vmatprep.subr.mxu0 0.0
      %1121 = vmatpush1.msra.mxu0 0.0
      %1122 = vmatprep.subr.mxu0 0.0
      %1123 = vmatpush1.msra.mxu0 0.0
      %1124 = vmatprep.subr.mxu0 0.0
      %1125 = vmatpush1.msra.mxu0 0.0
      %1126 = vmatprep.subr.mxu0 0.0
      %1127 = vmatpush1.msra.mxu0 0.0
      %1128 = vmatprep.subr.mxu0 0.0
      %1129 = vmatpush1.msra.mxu0 0.0
      %1130 = vmatprep.subr.mxu0 0.0
      %1131 = vmatpush1.msra.mxu0 0.0
      %1132 = vmatprep.subr.mxu0 0.0
      %1133 = vmatpush1.msra.mxu0 0.0
      %1134 = vmatprep.subr.mxu0 0.0
      %1135 = vmatpush1.msra.mxu0 0.0
      %1136 = vmatprep.subr.mxu0 0.0
      %1137 = vmatpush1.msra.mxu0 0.0
      %1138 = vmatprep.subr.mxu0 0.0
      %1139 = vmatpush1.msra.mxu0 0.0
      %1140 = vmatprep.subr.mxu0 0.0
      %1141 = vmatpush1.msra.mxu0 0.0
      %1142 = vmatprep.subr.mxu0 0.0
      %1143 = vmatpush1.msra.mxu0 0.0
      %1144 = vmatprep.subr.mxu0 0.0
      %1145 = vmatpush1.msra.mxu0 0.0
      %1146 = vmatprep.subr.mxu0 0.0
      %1147 = vmatpush1.msra.mxu0 0.0
      %1148 = vmatprep.subr.mxu0 0.0
      %1149 = vmatpush1.msra.mxu0 0.0
      %1150 = vmatprep.subr.mxu0 0.0
      %1151 = vmatpush1.msra.mxu0 0.0
      %1152 = vmatprep.subr.mxu0 0.0
      %1153 = vmatpush1.msra.mxu0 0.0
      %1154 = vmatprep.subr.mxu0 0.0
      %1155 = vmatpush1.msra.mxu0 0.0
      %1156 = vmatprep.subr.mxu0 0.0
      %1157 = vmatpush1.msra.mxu0 0.0
      %1158 = vmatprep.mubr.f32.mxu0 0.0
      %1159 = vmatmul.mubr.f32.gmra.mrb[0].mxu0 %v1086
      %v1160 = vpop.f32.mrb[0].mxu0
      %v1161 = vadd.f32 0.0, %v1160
      %v1162 = vpop.f32.mrb[0].mxu0
      %v1163 = vadd.f32 0.0, %v1162
      %1164 = vdwg.mxu0
      %1165 = vmatprep.subr.mxu0 0.0
      %1166 = vmatpush1.msra.mxu0 %v1092
      %1167 = vmatprep.subr.mxu0 0.0
      %1168 = vmatpush1.msra.mxu0 0.0
      %1169 = vmatprep.subr.mxu0 0.0
      %1170 = vmatpush1.msra.mxu0 0.0
      %1171 = vmatprep.subr.mxu0 0.0
      %1172 = vmatpush1.msra.mxu0 0.0
      %1173 = vmatprep.subr.mxu0 0.0
      %1174 = vmatpush1.msra.mxu0 0.0
      %1175 = vmatprep.subr.mxu0 0.0
      %1176 = vmatpush1.msra.mxu0 0.0
      %1177 = vmatprep.subr.mxu0 0.0
      %1178 = vmatpush1.msra.mxu0 0.0
      %1179 = vmatprep.subr.mxu0 0.0
      %1180 = vmatpush1.msra.mxu0 0.0
      %1181 = vmatprep.subr.mxu0 0.0
      %1182 = vmatpush1.msra.mxu0 0.0
      %1183 = vmatprep.subr.mxu0 0.0
      %1184 = vmatpush1.msra.mxu0 0.0
      %1185 = vmatprep.subr.mxu0 0.0
      %1186 = vmatpush1.msra.mxu0 0.0
      %1187 = vmatprep.subr.mxu0 0.0
      %1188 = vmatpush1.msra.mxu0 0.0
      %1189 = vmatprep.subr.mxu0 0.0
      %1190 = vmatpush1.msra.mxu0 0.0
      %1191 = vmatprep.subr.mxu0 0.0
      %1192 = vmatpush1.msra.mxu0 0.0
      %1193 = vmatprep.subr.mxu0 0.0
      %1194 = vmatpush1.msra.mxu0 0.0
      %1195 = vmatprep.subr.mxu0 0.0
      %1196 = vmatpush1.msra.mxu0 0.0
      %1197 = vmatprep.subr.mxu0 0.0
      %1198 = vmatpush1.msra.mxu0 0.0
      %1199 = vmatprep.subr.mxu0 0.0
      %1200 = vmatpush1.msra.mxu0 0.0
      %1201 = vmatprep.subr.mxu0 0.0
      %1202 = vmatpush1.msra.mxu0 0.0
      %1203 = vmatprep.subr.mxu0 0.0
      %1204 = vmatpush1.msra.mxu0 0.0
      %1205 = vmatprep.subr.mxu0 0.0
      %1206 = vmatpush1.msra.mxu0 0.0
      %1207 = vmatprep.subr.mxu0 0.0
      %1208 = vmatpush1.msra.mxu0 0.0
      %1209 = vmatprep.subr.mxu0 0.0
      %1210 = vmatpush1.msra.mxu0 0.0
      %1211 = vmatprep.subr.mxu0 0.0
      %1212 = vmatpush1.msra.mxu0 0.0
      %1213 = vmatprep.subr.mxu0 0.0
      %1214 = vmatpush1.msra.mxu0 0.0
      %1215 = vmatprep.subr.mxu0 0.0
      %1216 = vmatpush1.msra.mxu0 0.0
      %1217 = vmatprep.subr.mxu0 0.0
      %1218 = vmatpush1.msra.mxu0 0.0
      %1219 = vmatprep.subr.mxu0 0.0
      %1220 = vmatpush1.msra.mxu0 0.0
      %1221 = vmatprep.subr.mxu0 0.0
      %1222 = vmatpush1.msra.mxu0 0.0
      %1223 = vmatprep.subr.mxu0 0.0
      %1224 = vmatpush1.msra.mxu0 0.0
      %1225 = vmatprep.subr.mxu0 0.0
      %1226 = vmatpush1.msra.mxu0 0.0
      %1227 = vmatprep.subr.mxu0 0.0
      %1228 = vmatpush1.msra.mxu0 0.0
      %1229 = vmatprep.mubr.f32.mxu0 0.0
      %1230 = vmatmul.mubr.f32.gmra.mrb[0].mxu0 %v1086
      %v1231 = vpop.f32.mrb[0].mxu0
      %v1232 = vadd.f32 0.0, %v1231
      %v1233 = vpop.f32.mrb[0].mxu0
      %1234 = vdwg.mxu0
      %v1235 = vadd.f32 %v1068, %v1161
      %v1236 = vadd.f32 %v1069, %v1163
      %v1237 = vadd.f32 %v1070, %v1232
      %s1238 = scalar_lea.vmem %s4, 16
      %v1239 = vld [vmem:[%s1238] sm:$0xf]
      %v1241 = vsel %vm590, %v1239, 0
      %v1243 = vsel %vm594, %v567, 0
      %v1245 = vsel %vm594, %v568, 0
      %v1247 = vsel %vm594, %v569, 0
      %1249 = vmatprep.subr.mxu0 %v1245
      %1250 = vmatpush1.msra.mxu0 %v1243
      %1251 = vmatprep.subr.mxu0 0.0
      %1252 = vmatpush1.msra.mxu0 0.0
      %1253 = vmatprep.subr.mxu0 0.0
      %1254 = vmatpush1.msra.mxu0 0.0
      %1255 = vmatprep.subr.mxu0 0.0
      %1256 = vmatpush1.msra.mxu0 0.0
      %1257 = vmatprep.subr.mxu0 0.0
      %1258 = vmatpush1.msra.mxu0 0.0
      %1259 = vmatprep.subr.mxu0 0.0
      %1260 = vmatpush1.msra.mxu0 0.0
      %1261 = vmatprep.subr.mxu0 0.0
      %1262 = vmatpush1.msra.mxu0 0.0
      %1263 = vmatprep.subr.mxu0 0.0
      %1264 = vmatpush1.msra.mxu0 0.0
      %1265 = vmatprep.subr.mxu0 0.0
      %1266 = vmatpush1.msra.mxu0 0.0
      %1267 = vmatprep.subr.mxu0 0.0
      %1268 = vmatpush1.msra.mxu0 0.0
      %1269 = vmatprep.subr.mxu0 0.0
      %1270 = vmatpush1.msra.mxu0 0.0
      %1271 = vmatprep.subr.mxu0 0.0
      %1272 = vmatpush1.msra.mxu0 0.0
      %1273 = vmatprep.subr.mxu0 0.0
      %1274 = vmatpush1.msra.mxu0 0.0
      %1275 = vmatprep.subr.mxu0 0.0
      %1276 = vmatpush1.msra.mxu0 0.0
      %1277 = vmatprep.subr.mxu0 0.0
      %1278 = vmatpush1.msra.mxu0 0.0
      %1279 = vmatprep.subr.mxu0 0.0
      %1280 = vmatpush1.msra.mxu0 0.0
      %1281 = vmatprep.subr.mxu0 0.0
      %1282 = vmatpush1.msra.mxu0 0.0
      %1283 = vmatprep.subr.mxu0 0.0
      %1284 = vmatpush1.msra.mxu0 0.0
      %1285 = vmatprep.subr.mxu0 0.0
      %1286 = vmatpush1.msra.mxu0 0.0
      %1287 = vmatprep.subr.mxu0 0.0
      %1288 = vmatpush1.msra.mxu0 0.0
      %1289 = vmatprep.subr.mxu0 0.0
      %1290 = vmatpush1.msra.mxu0 0.0
      %1291 = vmatprep.subr.mxu0 0.0
      %1292 = vmatpush1.msra.mxu0 0.0
      %1293 = vmatprep.subr.mxu0 0.0
      %1294 = vmatpush1.msra.mxu0 0.0
      %1295 = vmatprep.subr.mxu0 0.0
      %1296 = vmatpush1.msra.mxu0 0.0
      %1297 = vmatprep.subr.mxu0 0.0
      %1298 = vmatpush1.msra.mxu0 0.0
      %1299 = vmatprep.subr.mxu0 0.0
      %1300 = vmatpush1.msra.mxu0 0.0
      %1301 = vmatprep.subr.mxu0 0.0
      %1302 = vmatpush1.msra.mxu0 0.0
      %1303 = vmatprep.subr.mxu0 0.0
      %1304 = vmatpush1.msra.mxu0 0.0
      %1305 = vmatprep.subr.mxu0 0.0
      %1306 = vmatpush1.msra.mxu0 0.0
      %1307 = vmatprep.subr.mxu0 0.0
      %1308 = vmatpush1.msra.mxu0 0.0
      %1309 = vmatprep.subr.mxu0 0.0
      %1310 = vmatpush1.msra.mxu0 0.0
      %1311 = vmatprep.subr.mxu0 0.0
      %1312 = vmatpush1.msra.mxu0 0.0
      %1313 = vmatprep.mubr.f32.mxu0 0.0
      %1314 = vmatmul.mubr.f32.gmra.mrb[0].mxu0 %v1241
      %v1315 = vpop.f32.mrb[0].mxu0
      %v1316 = vadd.f32 0.0, %v1315
      %v1317 = vpop.f32.mrb[0].mxu0
      %v1318 = vadd.f32 0.0, %v1317
      %1319 = vdwg.mxu0
      %1320 = vmatprep.subr.mxu0 0.0
      %1321 = vmatpush1.msra.mxu0 %v1247
      %1322 = vmatprep.subr.mxu0 0.0
      %1323 = vmatpush1.msra.mxu0 0.0
      %1324 = vmatprep.subr.mxu0 0.0
      %1325 = vmatpush1.msra.mxu0 0.0
      %1326 = vmatprep.subr.mxu0 0.0
      %1327 = vmatpush1.msra.mxu0 0.0
      %1328 = vmatprep.subr.mxu0 0.0
      %1329 = vmatpush1.msra.mxu0 0.0
      %1330 = vmatprep.subr.mxu0 0.0
      %1331 = vmatpush1.msra.mxu0 0.0
      %1332 = vmatprep.subr.mxu0 0.0
      %1333 = vmatpush1.msra.mxu0 0.0
      %1334 = vmatprep.subr.mxu0 0.0
      %1335 = vmatpush1.msra.mxu0 0.0
      %1336 = vmatprep.subr.mxu0 0.0
      %1337 = vmatpush1.msra.mxu0 0.0
      %1338 = vmatprep.subr.mxu0 0.0
      %1339 = vmatpush1.msra.mxu0 0.0
      %1340 = vmatprep.subr.mxu0 0.0
      %1341 = vmatpush1.msra.mxu0 0.0
      %1342 = vmatprep.subr.mxu0 0.0
      %1343 = vmatpush1.msra.mxu0 0.0
      %1344 = vmatprep.subr.mxu0 0.0
      %1345 = vmatpush1.msra.mxu0 0.0
      %1346 = vmatprep.subr.mxu0 0.0
      %1347 = vmatpush1.msra.mxu0 0.0
      %1348 = vmatprep.subr.mxu0 0.0
      %1349 = vmatpush1.msra.mxu0 0.0
      %1350 = vmatprep.subr.mxu0 0.0
      %1351 = vmatpush1.msra.mxu0 0.0
      %1352 = vmatprep.subr.mxu0 0.0
      %1353 = vmatpush1.msra.mxu0 0.0
      %1354 = vmatprep.subr.mxu0 0.0
      %1355 = vmatpush1.msra.mxu0 0.0
      %1356 = vmatprep.subr.mxu0 0.0
      %1357 = vmatpush1.msra.mxu0 0.0
      %1358 = vmatprep.subr.mxu0 0.0
      %1359 = vmatpush1.msra.mxu0 0.0
      %1360 = vmatprep.subr.mxu0 0.0
      %1361 = vmatpush1.msra.mxu0 0.0
      %1362 = vmatprep.subr.mxu0 0.0
      %1363 = vmatpush1.msra.mxu0 0.0
      %1364 = vmatprep.subr.mxu0 0.0
      %1365 = vmatpush1.msra.mxu0 0.0
      %1366 = vmatprep.subr.mxu0 0.0
      %1367 = vmatpush1.msra.mxu0 0.0
      %1368 = vmatprep.subr.mxu0 0.0
      %1369 = vmatpush1.msra.mxu0 0.0
      %1370 = vmatprep.subr.mxu0 0.0
      %1371 = vmatpush1.msra.mxu0 0.0
      %1372 = vmatprep.subr.mxu0 0.0
      %1373 = vmatpush1.msra.mxu0 0.0
      %1374 = vmatprep.subr.mxu0 0.0
      %1375 = vmatpush1.msra.mxu0 0.0
      %1376 = vmatprep.subr.mxu0 0.0
      %1377 = vmatpush1.msra.mxu0 0.0
      %1378 = vmatprep.subr.mxu0 0.0
      %1379 = vmatpush1.msra.mxu0 0.0
      %1380 = vmatprep.subr.mxu0 0.0
      %1381 = vmatpush1.msra.mxu0 0.0
      %1382 = vmatprep.subr.mxu0 0.0
      %1383 = vmatpush1.msra.mxu0 0.0
      %1384 = vmatprep.mubr.f32.mxu0 0.0
      %1385 = vmatmul.mubr.f32.gmra.mrb[0].mxu0 %v1241
      %v1386 = vpop.f32.mrb[0].mxu0
      %v1387 = vadd.f32 0.0, %v1386
      %v1388 = vpop.f32.mrb[0].mxu0
      %1389 = vdwg.mxu0
      %v1390 = vadd.f32 %v1235, %v1316
      %v1391 = vadd.f32 %v1236, %v1318
      %v1392 = vadd.f32 %v1237, %v1387
      %s1393 = scalar_lea.vmem %s4, 20
      %v1394 = vld [vmem:[%s1393] sm:$0xf]
      %1396 = vrot.lane.b32.xlu0 %v567, 127
      %v1397 = vpop.permute.xlu0 %1396
      %1398 = vrot.lane.b32.xlu0 %v568, 127
      %v1399 = vpop.permute.xlu0 %1398
      %1400 = vrot.lane.b32.xlu0 %v569, 127
      %v1401 = vpop.permute.xlu0 %1400
      %1402 = vrot.lane.b32.xlu0 %v570, 127
      %v1403 = vpop.permute.xlu0 %1402
      %vm1404 = vcmask 1039360
      %v1405 = vsel %vm1404, %v1397, %v1399
      %v1406 = vsel %vm1404, %v1399, %v1401
      %v1407 = vsel %vm1404, %v1401, %v1403
      %v1409 = vsel %vm590, %v1394, 0
      %v1411 = vsel %vm594, %v1405, 0
      %v1413 = vsel %vm594, %v1406, 0
      %v1415 = vsel %vm594, %v1407, 0
      %1417 = vmatprep.subr.mxu0 %v1413
      %1418 = vmatpush1.msra.mxu0 %v1411
      %1419 = vmatprep.subr.mxu0 0.0
      %1420 = vmatpush1.msra.mxu0 0.0
      %1421 = vmatprep.subr.mxu0 0.0
      %1422 = vmatpush1.msra.mxu0 0.0
      %1423 = vmatprep.subr.mxu0 0.0
      %1424 = vmatpush1.msra.mxu0 0.0
      %1425 = vmatprep.subr.mxu0 0.0
      %1426 = vmatpush1.msra.mxu0 0.0
      %1427 = vmatprep.subr.mxu0 0.0
      %1428 = vmatpush1.msra.mxu0 0.0
      %1429 = vmatprep.subr.mxu0 0.0
      %1430 = vmatpush1.msra.mxu0 0.0
      %1431 = vmatprep.subr.mxu0 0.0
      %1432 = vmatpush1.msra.mxu0 0.0
      %1433 = vmatprep.subr.mxu0 0.0
      %1434 = vmatpush1.msra.mxu0 0.0
      %1435 = vmatprep.subr.mxu0 0.0
      %1436 = vmatpush1.msra.mxu0 0.0
      %1437 = vmatprep.subr.mxu0 0.0
      %1438 = vmatpush1.msra.mxu0 0.0
      %1439 = vmatprep.subr.mxu0 0.0
      %1440 = vmatpush1.msra.mxu0 0.0
      %1441 = vmatprep.subr.mxu0 0.0
      %1442 = vmatpush1.msra.mxu0 0.0
      %1443 = vmatprep.subr.mxu0 0.0
      %1444 = vmatpush1.msra.mxu0 0.0
      %1445 = vmatprep.subr.mxu0 0.0
      %1446 = vmatpush1.msra.mxu0 0.0
      %1447 = vmatprep.subr.mxu0 0.0
      %1448 = vmatpush1.msra.mxu0 0.0
      %1449 = vmatprep.subr.mxu0 0.0
      %1450 = vmatpush1.msra.mxu0 0.0
      %1451 = vmatprep.subr.mxu0 0.0
      %1452 = vmatpush1.msra.mxu0 0.0
      %1453 = vmatprep.subr.mxu0 0.0
      %1454 = vmatpush1.msra.mxu0 0.0
      %1455 = vmatprep.subr.mxu0 0.0
      %1456 = vmatpush1.msra.mxu0 0.0
      %1457 = vmatprep.subr.mxu0 0.0
      %1458 = vmatpush1.msra.mxu0 0.0
      %1459 = vmatprep.subr.mxu0 0.0
      %1460 = vmatpush1.msra.mxu0 0.0
      %1461 = vmatprep.subr.mxu0 0.0
      %1462 = vmatpush1.msra.mxu0 0.0
      %1463 = vmatprep.subr.mxu0 0.0
      %1464 = vmatpush1.msra.mxu0 0.0
      %1465 = vmatprep.subr.mxu0 0.0
      %1466 = vmatpush1.msra.mxu0 0.0
      %1467 = vmatprep.subr.mxu0 0.0
      %1468 = vmatpush1.msra.mxu0 0.0
      %1469 = vmatprep.subr.mxu0 0.0
      %1470 = vmatpush1.msra.mxu0 0.0
      %1471 = vmatprep.subr.mxu0 0.0
      %1472 = vmatpush1.msra.mxu0 0.0
      %1473 = vmatprep.subr.mxu0 0.0
      %1474 = vmatpush1.msra.mxu0 0.0
      %1475 = vmatprep.subr.mxu0 0.0
      %1476 = vmatpush1.msra.mxu0 0.0
      %1477 = vmatprep.subr.mxu0 0.0
      %1478 = vmatpush1.msra.mxu0 0.0
      %1479 = vmatprep.subr.mxu0 0.0
      %1480 = vmatpush1.msra.mxu0 0.0
      %1481 = vmatprep.mubr.f32.mxu0 0.0
      %1482 = vmatmul.mubr.f32.gmra.mrb[0].mxu0 %v1409
      %v1483 = vpop.f32.mrb[0].mxu0
      %v1484 = vadd.f32 0.0, %v1483
      %v1485 = vpop.f32.mrb[0].mxu0
      %v1486 = vadd.f32 0.0, %v1485
      %1487 = vdwg.mxu0
      %1488 = vmatprep.subr.mxu0 0.0
      %1489 = vmatpush1.msra.mxu0 %v1415
      %1490 = vmatprep.subr.mxu0 0.0
      %1491 = vmatpush1.msra.mxu0 0.0
      %1492 = vmatprep.subr.mxu0 0.0
      %1493 = vmatpush1.msra.mxu0 0.0
      %1494 = vmatprep.subr.mxu0 0.0
      %1495 = vmatpush1.msra.mxu0 0.0
      %1496 = vmatprep.subr.mxu0 0.0
      %1497 = vmatpush1.msra.mxu0 0.0
      %1498 = vmatprep.subr.mxu0 0.0
      %1499 = vmatpush1.msra.mxu0 0.0
      %1500 = vmatprep.subr.mxu0 0.0
      %1501 = vmatpush1.msra.mxu0 0.0
      %1502 = vmatprep.subr.mxu0 0.0
      %1503 = vmatpush1.msra.mxu0 0.0
      %1504 = vmatprep.subr.mxu0 0.0
      %1505 = vmatpush1.msra.mxu0 0.0
      %1506 = vmatprep.subr.mxu0 0.0
      %1507 = vmatpush1.msra.mxu0 0.0
      %1508 = vmatprep.subr.mxu0 0.0
      %1509 = vmatpush1.msra.mxu0 0.0
      %1510 = vmatprep.subr.mxu0 0.0
      %1511 = vmatpush1.msra.mxu0 0.0
      %1512 = vmatprep.subr.mxu0 0.0
      %1513 = vmatpush1.msra.mxu0 0.0
      %1514 = vmatprep.subr.mxu0 0.0
      %1515 = vmatpush1.msra.mxu0 0.0
      %1516 = vmatprep.subr.mxu0 0.0
      %1517 = vmatpush1.msra.mxu0 0.0
      %1518 = vmatprep.subr.mxu0 0.0
      %1519 = vmatpush1.msra.mxu0 0.0
      %1520 = vmatprep.subr.mxu0 0.0
      %1521 = vmatpush1.msra.mxu0 0.0
      %1522 = vmatprep.subr.mxu0 0.0
      %1523 = vmatpush1.msra.mxu0 0.0
      %1524 = vmatprep.subr.mxu0 0.0
      %1525 = vmatpush1.msra.mxu0 0.0
      %1526 = vmatprep.subr.mxu0 0.0
      %1527 = vmatpush1.msra.mxu0 0.0
      %1528 = vmatprep.subr.mxu0 0.0
      %1529 = vmatpush1.msra.mxu0 0.0
      %1530 = vmatprep.subr.mxu0 0.0
      %1531 = vmatpush1.msra.mxu0 0.0
      %1532 = vmatprep.subr.mxu0 0.0
      %1533 = vmatpush1.msra.mxu0 0.0
      %1534 = vmatprep.subr.mxu0 0.0
      %1535 = vmatpush1.msra.mxu0 0.0
      %1536 = vmatprep.subr.mxu0 0.0
      %1537 = vmatpush1.msra.mxu0 0.0
      %1538 = vmatprep.subr.mxu0 0.0
      %1539 = vmatpush1.msra.mxu0 0.0
      %1540 = vmatprep.subr.mxu0 0.0
      %1541 = vmatpush1.msra.mxu0 0.0
      %1542 = vmatprep.subr.mxu0 0.0
      %1543 = vmatpush1.msra.mxu0 0.0
      %1544 = vmatprep.subr.mxu0 0.0
      %1545 = vmatpush1.msra.mxu0 0.0
      %1546 = vmatprep.subr.mxu0 0.0
      %1547 = vmatpush1.msra.mxu0 0.0
      %1548 = vmatprep.subr.mxu0 0.0
      %1549 = vmatpush1.msra.mxu0 0.0
      %1550 = vmatprep.subr.mxu0 0.0
      %1551 = vmatpush1.msra.mxu0 0.0
      %1552 = vmatprep.mubr.f32.mxu0 0.0
      %1553 = vmatmul.mubr.f32.gmra.mrb[0].mxu0 %v1409
      %v1554 = vpop.f32.mrb[0].mxu0
      %v1555 = vadd.f32 0.0, %v1554
      %v1556 = vpop.f32.mrb[0].mxu0
      %1557 = vdwg.mxu0
      %v1558 = vadd.f32 %v1390, %v1484
      %v1559 = vadd.f32 %v1391, %v1486
      %v1560 = vadd.f32 %v1392, %v1555
      %s1561 = scalar_lea.vmem %s4, 24
      %v1562 = vld [vmem:[%s1561] sm:$0xf]
      %1563 = vrot.lane.b32.xlu0 %v567, 111
      %v1564 = vpop.permute.xlu0 %1563
      %1565 = vrot.lane.b32.xlu0 %v568, 111
      %v1566 = vpop.permute.xlu0 %1565
      %1567 = vrot.lane.b32.xlu0 %v569, 111
      %v1568 = vpop.permute.xlu0 %1567
      %1569 = vrot.lane.b32.xlu0 %v570, 111
      %v1570 = vpop.permute.xlu0 %1569
      %vm1571 = vcmask 908288
      %v1572 = vsel %vm1571, %v1564, %v1566
      %v1573 = vsel %vm1571, %v1566, %v1568
      %v1574 = vsel %vm1571, %v1568, %v1570
      %v1576 = vsel %vm590, %v1562, 0
      %v1578 = vsel %vm594, %v1572, 0
      %v1580 = vsel %vm594, %v1573, 0
      %v1582 = vsel %vm594, %v1574, 0
      %1584 = vmatprep.subr.mxu0 %v1580
      %1585 = vmatpush1.msra.mxu0 %v1578
      %1586 = vmatprep.subr.mxu0 0.0
      %1587 = vmatpush1.msra.mxu0 0.0
      %1588 = vmatprep.subr.mxu0 0.0
      %1589 = vmatpush1.msra.mxu0 0.0
      %1590 = vmatprep.subr.mxu0 0.0
      %1591 = vmatpush1.msra.mxu0 0.0
      %1592 = vmatprep.subr.mxu0 0.0
      %1593 = vmatpush1.msra.mxu0 0.0
      %1594 = vmatprep.subr.mxu0 0.0
      %1595 = vmatpush1.msra.mxu0 0.0
      %1596 = vmatprep.subr.mxu0 0.0
      %1597 = vmatpush1.msra.mxu0 0.0
      %1598 = vmatprep.subr.mxu0 0.0
      %1599 = vmatpush1.msra.mxu0 0.0
      %1600 = vmatprep.subr.mxu0 0.0
      %1601 = vmatpush1.msra.mxu0 0.0
      %1602 = vmatprep.subr.mxu0 0.0
      %1603 = vmatpush1.msra.mxu0 0.0
      %1604 = vmatprep.subr.mxu0 0.0
      %1605 = vmatpush1.msra.mxu0 0.0
      %1606 = vmatprep.subr.mxu0 0.0
      %1607 = vmatpush1.msra.mxu0 0.0
      %1608 = vmatprep.subr.mxu0 0.0
      %1609 = vmatpush1.msra.mxu0 0.0
      %1610 = vmatprep.subr.mxu0 0.0
      %1611 = vmatpush1.msra.mxu0 0.0
      %1612 = vmatprep.subr.mxu0 0.0
      %1613 = vmatpush1.msra.mxu0 0.0
      %1614 = vmatprep.subr.mxu0 0.0
      %1615 = vmatpush1.msra.mxu0 0.0
      %1616 = vmatprep.subr.mxu0 0.0
      %1617 = vmatpush1.msra.mxu0 0.0
      %1618 = vmatprep.subr.mxu0 0.0
      %1619 = vmatpush1.msra.mxu0 0.0
      %1620 = vmatprep.subr.mxu0 0.0
      %1621 = vmatpush1.msra.mxu0 0.0
      %1622 = vmatprep.subr.mxu0 0.0
      %1623 = vmatpush1.msra.mxu0 0.0
      %1624 = vmatprep.subr.mxu0 0.0
      %1625 = vmatpush1.msra.mxu0 0.0
      %1626 = vmatprep.subr.mxu0 0.0
      %1627 = vmatpush1.msra.mxu0 0.0
      %1628 = vmatprep.subr.mxu0 0.0
      %1629 = vmatpush1.msra.mxu0 0.0
      %1630 = vmatprep.subr.mxu0 0.0
      %1631 = vmatpush1.msra.mxu0 0.0
      %1632 = vmatprep.subr.mxu0 0.0
      %1633 = vmatpush1.msra.mxu0 0.0
      %1634 = vmatprep.subr.mxu0 0.0
      %1635 = vmatpush1.msra.mxu0 0.0
      %1636 = vmatprep.subr.mxu0 0.0
      %1637 = vmatpush1.msra.mxu0 0.0
      %1638 = vmatprep.subr.mxu0 0.0
      %1639 = vmatpush1.msra.mxu0 0.0
      %1640 = vmatprep.subr.mxu0 0.0
      %1641 = vmatpush1.msra.mxu0 0.0
      %1642 = vmatprep.subr.mxu0 0.0
      %1643 = vmatpush1.msra.mxu0 0.0
      %1644 = vmatprep.subr.mxu0 0.0
      %1645 = vmatpush1.msra.mxu0 0.0
      %1646 = vmatprep.subr.mxu0 0.0
      %1647 = vmatpush1.msra.mxu0 0.0
      %1648 = vmatprep.mubr.f32.mxu0 0.0
      %1649 = vmatmul.mubr.f32.gmra.mrb[0].mxu0 %v1576
      %v1650 = vpop.f32.mrb[0].mxu0
      %v1651 = vadd.f32 0.0, %v1650
      %v1652 = vpop.f32.mrb[0].mxu0
      %v1653 = vadd.f32 0.0, %v1652
      %1654 = vdwg.mxu0
      %1655 = vmatprep.subr.mxu0 0.0
      %1656 = vmatpush1.msra.mxu0 %v1582
      %1657 = vmatprep.subr.mxu0 0.0
      %1658 = vmatpush1.msra.mxu0 0.0
      %1659 = vmatprep.subr.mxu0 0.0
      %1660 = vmatpush1.msra.mxu0 0.0
      %1661 = vmatprep.subr.mxu0 0.0
      %1662 = vmatpush1.msra.mxu0 0.0
      %1663 = vmatprep.subr.mxu0 0.0
      %1664 = vmatpush1.msra.mxu0 0.0
      %1665 = vmatprep.subr.mxu0 0.0
      %1666 = vmatpush1.msra.mxu0 0.0
      %1667 = vmatprep.subr.mxu0 0.0
      %1668 = vmatpush1.msra.mxu0 0.0
      %1669 = vmatprep.subr.mxu0 0.0
      %1670 = vmatpush1.msra.mxu0 0.0
      %1671 = vmatprep.subr.mxu0 0.0
      %1672 = vmatpush1.msra.mxu0 0.0
      %1673 = vmatprep.subr.mxu0 0.0
      %1674 = vmatpush1.msra.mxu0 0.0
      %1675 = vmatprep.subr.mxu0 0.0
      %1676 = vmatpush1.msra.mxu0 0.0
      %1677 = vmatprep.subr.mxu0 0.0
      %1678 = vmatpush1.msra.mxu0 0.0
      %1679 = vmatprep.subr.mxu0 0.0
      %1680 = vmatpush1.msra.mxu0 0.0
      %1681 = vmatprep.subr.mxu0 0.0
      %1682 = vmatpush1.msra.mxu0 0.0
      %1683 = vmatprep.subr.mxu0 0.0
      %1684 = vmatpush1.msra.mxu0 0.0
      %1685 = vmatprep.subr.mxu0 0.0
      %1686 = vmatpush1.msra.mxu0 0.0
      %1687 = vmatprep.subr.mxu0 0.0
      %1688 = vmatpush1.msra.mxu0 0.0
      %1689 = vmatprep.subr.mxu0 0.0
      %1690 = vmatpush1.msra.mxu0 0.0
      %1691 = vmatprep.subr.mxu0 0.0
      %1692 = vmatpush1.msra.mxu0 0.0
      %1693 = vmatprep.subr.mxu0 0.0
      %1694 = vmatpush1.msra.mxu0 0.0
      %1695 = vmatprep.subr.mxu0 0.0
      %1696 = vmatpush1.msra.mxu0 0.0
      %1697 = vmatprep.subr.mxu0 0.0
      %1698 = vmatpush1.msra.mxu0 0.0
      %1699 = vmatprep.subr.mxu0 0.0
      %1700 = vmatpush1.msra.mxu0 0.0
      %1701 = vmatprep.subr.mxu0 0.0
      %1702 = vmatpush1.msra.mxu0 0.0
      %1703 = vmatprep.subr.mxu0 0.0
      %1704 = vmatpush1.msra.mxu0 0.0
      %1705 = vmatprep.subr.mxu0 0.0
      %1706 = vmatpush1.msra.mxu0 0.0
      %1707 = vmatprep.subr.mxu0 0.0
      %1708 = vmatpush1.msra.mxu0 0.0
      %1709 = vmatprep.subr.mxu0 0.0
      %1710 = vmatpush1.msra.mxu0 0.0
      %1711 = vmatprep.subr.mxu0 0.0
      %1712 = vmatpush1.msra.mxu0 0.0
      %1713 = vmatprep.subr.mxu0 0.0
      %1714 = vmatpush1.msra.mxu0 0.0
      %1715 = vmatprep.subr.mxu0 0.0
      %1716 = vmatpush1.msra.mxu0 0.0
      %1717 = vmatprep.subr.mxu0 0.0
      %1718 = vmatpush1.msra.mxu0 0.0
      %1719 = vmatprep.mubr.f32.mxu0 0.0
      %1720 = vmatmul.mubr.f32.gmra.mrb[0].mxu0 %v1576
      %v1721 = vpop.f32.mrb[0].mxu0
      %v1722 = vadd.f32 0.0, %v1721
      %v1723 = vpop.f32.mrb[0].mxu0
      %1724 = vdwg.mxu0
      %v1725 = vadd.f32 %v1558, %v1651
      %v1726 = vadd.f32 %v1559, %v1653
      %v1727 = vadd.f32 %v1560, %v1722
      %s1728 = scalar_lea.vmem %s4, 28
      %v1729 = vld [vmem:[%s1728] sm:$0xf]
      %1730 = vrot.lane.b32.xlu0 %v567, 110
      %v1731 = vpop.permute.xlu0 %1730
      %1732 = vrot.lane.b32.xlu0 %v568, 110
      %v1733 = vpop.permute.xlu0 %1732
      %1734 = vrot.lane.b32.xlu0 %v569, 110
      %v1735 = vpop.permute.xlu0 %1734
      %1736 = vrot.lane.b32.xlu0 %v570, 110
      %v1737 = vpop.permute.xlu0 %1736
      %vm1738 = vcmask 900096
      %v1739 = vsel %vm1738, %v1731, %v1733
      %v1740 = vsel %vm1738, %v1733, %v1735
      %v1741 = vsel %vm1738, %v1735, %v1737
      %v1743 = vsel %vm590, %v1729, 0
      %v1745 = vsel %vm594, %v1739, 0
      %v1747 = vsel %vm594, %v1740, 0
      %v1749 = vsel %vm594, %v1741, 0
      %1751 = vmatprep.subr.mxu0 %v1747
      %1752 = vmatpush1.msra.mxu0 %v1745
      %1753 = vmatprep.subr.mxu0 0.0
      %1754 = vmatpush1.msra.mxu0 0.0
      %1755 = vmatprep.subr.mxu0 0.0
      %1756 = vmatpush1.msra.mxu0 0.0
      %1757 = vmatprep.subr.mxu0 0.0
      %1758 = vmatpush1.msra.mxu0 0.0
      %1759 = vmatprep.subr.mxu0 0.0
      %1760 = vmatpush1.msra.mxu0 0.0
      %1761 = vmatprep.subr.mxu0 0.0
      %1762 = vmatpush1.msra.mxu0 0.0
      %1763 = vmatprep.subr.mxu0 0.0
      %1764 = vmatpush1.msra.mxu0 0.0
      %1765 = vmatprep.subr.mxu0 0.0
      %1766 = vmatpush1.msra.mxu0 0.0
      %1767 = vmatprep.subr.mxu0 0.0
      %1768 = vmatpush1.msra.mxu0 0.0
      %1769 = vmatprep.subr.mxu0 0.0
      %1770 = vmatpush1.msra.mxu0 0.0
      %1771 = vmatprep.subr.mxu0 0.0
      %1772 = vmatpush1.msra.mxu0 0.0
      %1773 = vmatprep.subr.mxu0 0.0
      %1774 = vmatpush1.msra.mxu0 0.0
      %1775 = vmatprep.subr.mxu0 0.0
      %1776 = vmatpush1.msra.mxu0 0.0
      %1777 = vmatprep.subr.mxu0 0.0
      %1778 = vmatpush1.msra.mxu0 0.0
      %1779 = vmatprep.subr.mxu0 0.0
      %1780 = vmatpush1.msra.mxu0 0.0
      %1781 = vmatprep.subr.mxu0 0.0
      %1782 = vmatpush1.msra.mxu0 0.0
      %1783 = vmatprep.subr.mxu0 0.0
      %1784 = vmatpush1.msra.mxu0 0.0
      %1785 = vmatprep.subr.mxu0 0.0
      %1786 = vmatpush1.msra.mxu0 0.0
      %1787 = vmatprep.subr.mxu0 0.0
      %1788 = vmatpush1.msra.mxu0 0.0
      %1789 = vmatprep.subr.mxu0 0.0
      %1790 = vmatpush1.msra.mxu0 0.0
      %1791 = vmatprep.subr.mxu0 0.0
      %1792 = vmatpush1.msra.mxu0 0.0
      %1793 = vmatprep.subr.mxu0 0.0
      %1794 = vmatpush1.msra.mxu0 0.0
      %1795 = vmatprep.subr.mxu0 0.0
      %1796 = vmatpush1.msra.mxu0 0.0
      %1797 = vmatprep.subr.mxu0 0.0
      %1798 = vmatpush1.msra.mxu0 0.0
      %1799 = vmatprep.subr.mxu0 0.0
      %1800 = vmatpush1.msra.mxu0 0.0
      %1801 = vmatprep.subr.mxu0 0.0
      %1802 = vmatpush1.msra.mxu0 0.0
      %1803 = vmatprep.subr.mxu0 0.0
      %1804 = vmatpush1.msra.mxu0 0.0
      %1805 = vmatprep.subr.mxu0 0.0
      %1806 = vmatpush1.msra.mxu0 0.0
      %1807 = vmatprep.subr.mxu0 0.0
      %1808 = vmatpush1.msra.mxu0 0.0
      %1809 = vmatprep.subr.mxu0 0.0
      %1810 = vmatpush1.msra.mxu0 0.0
      %1811 = vmatprep.subr.mxu0 0.0
      %1812 = vmatpush1.msra.mxu0 0.0
      %1813 = vmatprep.subr.mxu0 0.0
      %1814 = vmatpush1.msra.mxu0 0.0
      %1815 = vmatprep.mubr.f32.mxu0 0.0
      %1816 = vmatmul.mubr.f32.gmra.mrb[0].mxu0 %v1743
      %v1817 = vpop.f32.mrb[0].mxu0
      %v1818 = vadd.f32 0.0, %v1817
      %v1819 = vpop.f32.mrb[0].mxu0
      %v1820 = vadd.f32 0.0, %v1819
      %1821 = vdwg.mxu0
      %1822 = vmatprep.subr.mxu0 0.0
      %1823 = vmatpush1.msra.mxu0 %v1749
      %1824 = vmatprep.subr.mxu0 0.0
      %1825 = vmatpush1.msra.mxu0 0.0
      %1826 = vmatprep.subr.mxu0 0.0
      %1827 = vmatpush1.msra.mxu0 0.0
      %1828 = vmatprep.subr.mxu0 0.0
      %1829 = vmatpush1.msra.mxu0 0.0
      %1830 = vmatprep.subr.mxu0 0.0
      %1831 = vmatpush1.msra.mxu0 0.0
      %1832 = vmatprep.subr.mxu0 0.0
      %1833 = vmatpush1.msra.mxu0 0.0
      %1834 = vmatprep.subr.mxu0 0.0
      %1835 = vmatpush1.msra.mxu0 0.0
      %1836 = vmatprep.subr.mxu0 0.0
      %1837 = vmatpush1.msra.mxu0 0.0
      %1838 = vmatprep.subr.mxu0 0.0
      %1839 = vmatpush1.msra.mxu0 0.0
      %1840 = vmatprep.subr.mxu0 0.0
      %1841 = vmatpush1.msra.mxu0 0.0
      %1842 = vmatprep.subr.mxu0 0.0
      %1843 = vmatpush1.msra.mxu0 0.0
      %1844 = vmatprep.subr.mxu0 0.0
      %1845 = vmatpush1.msra.mxu0 0.0
      %1846 = vmatprep.subr.mxu0 0.0
      %1847 = vmatpush1.msra.mxu0 0.0
      %1848 = vmatprep.subr.mxu0 0.0
      %1849 = vmatpush1.msra.mxu0 0.0
      %1850 = vmatprep.subr.mxu0 0.0
      %1851 = vmatpush1.msra.mxu0 0.0
      %1852 = vmatprep.subr.mxu0 0.0
      %1853 = vmatpush1.msra.mxu0 0.0
      %1854 = vmatprep.subr.mxu0 0.0
      %1855 = vmatpush1.msra.mxu0 0.0
      %1856 = vmatprep.subr.mxu0 0.0
      %1857 = vmatpush1.msra.mxu0 0.0
      %1858 = vmatprep.subr.mxu0 0.0
      %1859 = vmatpush1.msra.mxu0 0.0
      %1860 = vmatprep.subr.mxu0 0.0
      %1861 = vmatpush1.msra.mxu0 0.0
      %1862 = vmatprep.subr.mxu0 0.0
      %1863 = vmatpush1.msra.mxu0 0.0
      %1864 = vmatprep.subr.mxu0 0.0
      %1865 = vmatpush1.msra.mxu0 0.0
      %1866 = vmatprep.subr.mxu0 0.0
      %1867 = vmatpush1.msra.mxu0 0.0
      %1868 = vmatprep.subr.mxu0 0.0
      %1869 = vmatpush1.msra.mxu0 0.0
      %1870 = vmatprep.subr.mxu0 0.0
      %1871 = vmatpush1.msra.mxu0 0.0
      %1872 = vmatprep.subr.mxu0 0.0
      %1873 = vmatpush1.msra.mxu0 0.0
      %1874 = vmatprep.subr.mxu0 0.0
      %1875 = vmatpush1.msra.mxu0 0.0
      %1876 = vmatprep.subr.mxu0 0.0
      %1877 = vmatpush1.msra.mxu0 0.0
      %1878 = vmatprep.subr.mxu0 0.0
      %1879 = vmatpush1.msra.mxu0 0.0
      %1880 = vmatprep.subr.mxu0 0.0
      %1881 = vmatpush1.msra.mxu0 0.0
      %1882 = vmatprep.subr.mxu0 0.0
      %1883 = vmatpush1.msra.mxu0 0.0
      %1884 = vmatprep.subr.mxu0 0.0
      %1885 = vmatpush1.msra.mxu0 0.0
      %1886 = vmatprep.mubr.f32.mxu0 0.0
      %1887 = vmatmul.mubr.f32.gmra.mrb[0].mxu0 %v1743
      %v1888 = vpop.f32.mrb[0].mxu0
      %v1889 = vadd.f32 0.0, %v1888
      %v1890 = vpop.f32.mrb[0].mxu0
      %1891 = vdwg.mxu0
      %v1892 = vadd.f32 %v1725, %v1818
      %v1893 = vadd.f32 %v1726, %v1820
      %v1894 = vadd.f32 %v1727, %v1889
      %s1895 = scalar_lea.vmem %s4, 32
      %v1896 = vld [vmem:[%s1895] sm:$0xf]
      %1897 = vrot.lane.b32.xlu0 %v567, 109
      %v1898 = vpop.permute.xlu0 %1897
      %1899 = vrot.lane.b32.xlu0 %v568, 109
      %v1900 = vpop.permute.xlu0 %1899
      %1901 = vrot.lane.b32.xlu0 %v569, 109
      %v1902 = vpop.permute.xlu0 %1901
      %1903 = vrot.lane.b32.xlu0 %v570, 109
      %v1904 = vpop.permute.xlu0 %1903
      %vm1905 = vcmask 891904
      %v1906 = vsel %vm1905, %v1898, %v1900
      %v1907 = vsel %vm1905, %v1900, %v1902
      %v1908 = vsel %vm1905, %v1902, %v1904
      %v1910 = vsel %vm590, %v1896, 0
      %v1912 = vsel %vm594, %v1906, 0
      %v1914 = vsel %vm594, %v1907, 0
      %v1916 = vsel %vm594, %v1908, 0
      %1918 = vmatprep.subr.mxu0 %v1914
      %1919 = vmatpush1.msra.mxu0 %v1912
      %1920 = vmatprep.subr.mxu0 0.0
      %1921 = vmatpush1.msra.mxu0 0.0
      %1922 = vmatprep.subr.mxu0 0.0
      %1923 = vmatpush1.msra.mxu0 0.0
      %1924 = vmatprep.subr.mxu0 0.0
      %1925 = vmatpush1.msra.mxu0 0.0
      %1926 = vmatprep.subr.mxu0 0.0
      %1927 = vmatpush1.msra.mxu0 0.0
      %1928 = vmatprep.subr.mxu0 0.0
      %1929 = vmatpush1.msra.mxu0 0.0
      %1930 = vmatprep.subr.mxu0 0.0
      %1931 = vmatpush1.msra.mxu0 0.0
      %1932 = vmatprep.subr.mxu0 0.0
      %1933 = vmatpush1.msra.mxu0 0.0
      %1934 = vmatprep.subr.mxu0 0.0
      %1935 = vmatpush1.msra.mxu0 0.0
      %1936 = vmatprep.subr.mxu0 0.0
      %1937 = vmatpush1.msra.mxu0 0.0
      %1938 = vmatprep.subr.mxu0 0.0
      %1939 = vmatpush1.msra.mxu0 0.0
      %1940 = vmatprep.subr.mxu0 0.0
      %1941 = vmatpush1.msra.mxu0 0.0
      %1942 = vmatprep.subr.mxu0 0.0
      %1943 = vmatpush1.msra.mxu0 0.0
      %1944 = vmatprep.subr.mxu0 0.0
      %1945 = vmatpush1.msra.mxu0 0.0
      %1946 = vmatprep.subr.mxu0 0.0
      %1947 = vmatpush1.msra.mxu0 0.0
      %1948 = vmatprep.subr.mxu0 0.0
      %1949 = vmatpush1.msra.mxu0 0.0
      %1950 = vmatprep.subr.mxu0 0.0
      %1951 = vmatpush1.msra.mxu0 0.0
      %1952 = vmatprep.subr.mxu0 0.0
      %1953 = vmatpush1.msra.mxu0 0.0
      %1954 = vmatprep.subr.mxu0 0.0
      %1955 = vmatpush1.msra.mxu0 0.0
      %1956 = vmatprep.subr.mxu0 0.0
      %1957 = vmatpush1.msra.mxu0 0.0
      %1958 = vmatprep.subr.mxu0 0.0
      %1959 = vmatpush1.msra.mxu0 0.0
      %1960 = vmatprep.subr.mxu0 0.0
      %1961 = vmatpush1.msra.mxu0 0.0
      %1962 = vmatprep.subr.mxu0 0.0
      %1963 = vmatpush1.msra.mxu0 0.0
      %1964 = vmatprep.subr.mxu0 0.0
      %1965 = vmatpush1.msra.mxu0 0.0
      %1966 = vmatprep.subr.mxu0 0.0
      %1967 = vmatpush1.msra.mxu0 0.0
      %1968 = vmatprep.subr.mxu0 0.0
      %1969 = vmatpush1.msra.mxu0 0.0
      %1970 = vmatprep.subr.mxu0 0.0
      %1971 = vmatpush1.msra.mxu0 0.0
      %1972 = vmatprep.subr.mxu0 0.0
      %1973 = vmatpush1.msra.mxu0 0.0
      %1974 = vmatprep.subr.mxu0 0.0
      %1975 = vmatpush1.msra.mxu0 0.0
      %1976 = vmatprep.subr.mxu0 0.0
      %1977 = vmatpush1.msra.mxu0 0.0
      %1978 = vmatprep.subr.mxu0 0.0
      %1979 = vmatpush1.msra.mxu0 0.0
      %1980 = vmatprep.subr.mxu0 0.0
      %1981 = vmatpush1.msra.mxu0 0.0
      %1982 = vmatprep.mubr.f32.mxu0 0.0
      %1983 = vmatmul.mubr.f32.gmra.mrb[0].mxu0 %v1910
      %v1984 = vpop.f32.mrb[0].mxu0
      %v1985 = vadd.f32 0.0, %v1984
      %v1986 = vpop.f32.mrb[0].mxu0
      %v1987 = vadd.f32 0.0, %v1986
      %1988 = vdwg.mxu0
      %1989 = vmatprep.subr.mxu0 0.0
      %1990 = vmatpush1.msra.mxu0 %v1916
      %1991 = vmatprep.subr.mxu0 0.0
      %1992 = vmatpush1.msra.mxu0 0.0
      %1993 = vmatprep.subr.mxu0 0.0
      %1994 = vmatpush1.msra.mxu0 0.0
      %1995 = vmatprep.subr.mxu0 0.0
      %1996 = vmatpush1.msra.mxu0 0.0
      %1997 = vmatprep.subr.mxu0 0.0
      %1998 = vmatpush1.msra.mxu0 0.0
      %1999 = vmatprep.subr.mxu0 0.0
      %2000 = vmatpush1.msra.mxu0 0.0
      %2001 = vmatprep.subr.mxu0 0.0
      %2002 = vmatpush1.msra.mxu0 0.0
      %2003 = vmatprep.subr.mxu0 0.0
      %2004 = vmatpush1.msra.mxu0 0.0
      %2005 = vmatprep.subr.mxu0 0.0
      %2006 = vmatpush1.msra.mxu0 0.0
      %2007 = vmatprep.subr.mxu0 0.0
      %2008 = vmatpush1.msra.mxu0 0.0
      %2009 = vmatprep.subr.mxu0 0.0
      %2010 = vmatpush1.msra.mxu0 0.0
      %2011 = vmatprep.subr.mxu0 0.0
      %2012 = vmatpush1.msra.mxu0 0.0
      %2013 = vmatprep.subr.mxu0 0.0
      %2014 = vmatpush1.msra.mxu0 0.0
      %2015 = vmatprep.subr.mxu0 0.0
      %2016 = vmatpush1.msra.mxu0 0.0
      %2017 = vmatprep.subr.mxu0 0.0
      %2018 = vmatpush1.msra.mxu0 0.0
      %2019 = vmatprep.subr.mxu0 0.0
      %2020 = vmatpush1.msra.mxu0 0.0
      %2021 = vmatprep.subr.mxu0 0.0
      %2022 = vmatpush1.msra.mxu0 0.0
      %2023 = vmatprep.subr.mxu0 0.0
      %2024 = vmatpush1.msra.mxu0 0.0
      %2025 = vmatprep.subr.mxu0 0.0
      %2026 = vmatpush1.msra.mxu0 0.0
      %2027 = vmatprep.subr.mxu0 0.0
      %2028 = vmatpush1.msra.mxu0 0.0
      %2029 = vmatprep.subr.mxu0 0.0
      %2030 = vmatpush1.msra.mxu0 0.0
      %2031 = vmatprep.subr.mxu0 0.0
      %2032 = vmatpush1.msra.mxu0 0.0
      %2033 = vmatprep.subr.mxu0 0.0
      %2034 = vmatpush1.msra.mxu0 0.0
      %2035 = vmatprep.subr.mxu0 0.0
      %2036 = vmatpush1.msra.mxu0 0.0
      %2037 = vmatprep.subr.mxu0 0.0
      %2038 = vmatpush1.msra.mxu0 0.0
      %2039 = vmatprep.subr.mxu0 0.0
      %2040 = vmatpush1.msra.mxu0 0.0
      %2041 = vmatprep.subr.mxu0 0.0
      %2042 = vmatpush1.msra.mxu0 0.0
      %2043 = vmatprep.subr.mxu0 0.0
      %2044 = vmatpush1.msra.mxu0 0.0
      %2045 = vmatprep.subr.mxu0 0.0
      %2046 = vmatpush1.msra.mxu0 0.0
      %2047 = vmatprep.subr.mxu0 0.0
      %2048 = vmatpush1.msra.mxu0 0.0
      %2049 = vmatprep.subr.mxu0 0.0
      %2050 = vmatpush1.msra.mxu0 0.0
      %2051 = vmatprep.subr.mxu0 0.0
      %2052 = vmatpush1.msra.mxu0 0.0
      %2053 = vmatprep.mubr.f32.mxu0 0.0
      %2054 = vmatmul.mubr.f32.gmra.mrb[0].mxu0 %v1910
      %v2055 = vpop.f32.mrb[0].mxu0
      %v2056 = vadd.f32 0.0, %v2055
      %v2057 = vpop.f32.mrb[0].mxu0
      %2058 = vdwg.mxu0
      %v2059 = vadd.f32 %v1892, %v1985
      %v2060 = vadd.f32 %v1893, %v1987
      %v2061 = vadd.f32 %v1894, %v2056
      %v2062 = vld [vmem:[%s5] sm:$0xff]
      %v2063 = vld [vmem:[%s5 + $0x8] sm:$0xff]
      %v2064 = vld [vmem:[%s6] sm:$0xff]
      %v2065 = vld [vmem:[%s6 + $0x8] sm:$0xff]
      %v2067 = vsel %vm318, %v2064, 0
      %v2070 = vsel %vm318, %v2065, 0
      %2072 = vmatprep.subr.mxu0 %v308
      %2073 = vmatpush1.msra.mxu0 %v307
      %2074 = vmatprep.subr.mxu0 0.0
      %2075 = vmatpush1.msra.mxu0 0.0
      %2076 = vmatprep.subr.mxu0 0.0
      %2077 = vmatpush1.msra.mxu0 0.0
      %2078 = vmatprep.subr.mxu0 0.0
      %2079 = vmatpush1.msra.mxu0 0.0
      %2080 = vmatprep.subr.mxu0 0.0
      %2081 = vmatpush1.msra.mxu0 0.0
      %2082 = vmatprep.subr.mxu0 0.0
      %2083 = vmatpush1.msra.mxu0 0.0
      %2084 = vmatprep.subr.mxu0 0.0
      %2085 = vmatpush1.msra.mxu0 0.0
      %2086 = vmatprep.subr.mxu0 0.0
      %2087 = vmatpush1.msra.mxu0 0.0
      %2088 = vmatprep.subr.mxu0 0.0
      %2089 = vmatpush1.msra.mxu0 0.0
      %2090 = vmatprep.subr.mxu0 0.0
      %2091 = vmatpush1.msra.mxu0 0.0
      %2092 = vmatprep.subr.mxu0 0.0
      %2093 = vmatpush1.msra.mxu0 0.0
      %2094 = vmatprep.subr.mxu0 0.0
      %2095 = vmatpush1.msra.mxu0 0.0
      %2096 = vmatprep.subr.mxu0 0.0
      %2097 = vmatpush1.msra.mxu0 0.0
      %2098 = vmatprep.subr.mxu0 0.0
      %2099 = vmatpush1.msra.mxu0 0.0
      %2100 = vmatprep.subr.mxu0 0.0
      %2101 = vmatpush1.msra.mxu0 0.0
      %2102 = vmatprep.subr.mxu0 0.0
      %2103 = vmatpush1.msra.mxu0 0.0
      %2104 = vmatprep.subr.mxu0 0.0
      %2105 = vmatpush1.msra.mxu0 0.0
      %2106 = vmatprep.subr.mxu0 0.0
      %2107 = vmatpush1.msra.mxu0 0.0
      %2108 = vmatprep.subr.mxu0 0.0
      %2109 = vmatpush1.msra.mxu0 0.0
      %2110 = vmatprep.subr.mxu0 0.0
      %2111 = vmatpush1.msra.mxu0 0.0
      %2112 = vmatprep.subr.mxu0 0.0
      %2113 = vmatpush1.msra.mxu0 0.0
      %2114 = vmatprep.subr.mxu0 0.0
      %2115 = vmatpush1.msra.mxu0 0.0
      %2116 = vmatprep.subr.mxu0 0.0
      %2117 = vmatpush1.msra.mxu0 0.0
      %2118 = vmatprep.subr.mxu0 0.0
      %2119 = vmatpush1.msra.mxu0 0.0
      %2120 = vmatprep.subr.mxu0 0.0
      %2121 = vmatpush1.msra.mxu0 0.0
      %2122 = vmatprep.subr.mxu0 0.0
      %2123 = vmatpush1.msra.mxu0 0.0
      %2124 = vmatprep.subr.mxu0 0.0
      %2125 = vmatpush1.msra.mxu0 0.0
      %2126 = vmatprep.subr.mxu0 0.0
      %2127 = vmatpush1.msra.mxu0 0.0
      %2128 = vmatprep.subr.mxu0 0.0
      %2129 = vmatpush1.msra.mxu0 0.0
      %2130 = vmatprep.subr.mxu0 0.0
      %2131 = vmatpush1.msra.mxu0 0.0
      %2132 = vmatprep.subr.mxu0 0.0
      %2133 = vmatpush1.msra.mxu0 0.0
      %2134 = vmatprep.subr.mxu0 0.0
      %2135 = vmatpush1.msra.mxu0 0.0
      %2136 = vmatprep.mubr.f32.mxu0 0.0
      %2137 = vmatmul.mubr.f32.gmra.mrb[0].mxu0 %v2067
      %v2138 = vpop.f32.mrb[0].mxu0
      %v2139 = vadd.f32 0.0, %v2138
      %v2140 = vpop.f32.mrb[0].mxu0
      %v2141 = vadd.f32 0.0, %v2140
      %2142 = vmatprep.mubr.f32.mxu0 0.0
      %2143 = vmatmul.mubr.f32.gmra.mrb[0].mxu0 %v2070
      %v2144 = vpop.f32.mrb[0].mxu0
      %v2145 = vadd.f32 0.0, %v2144
      %v2146 = vpop.f32.mrb[0].mxu0
      %v2147 = vadd.f32 0.0, %v2146
      %2148 = vdwg.mxu0
      %2149 = vmatprep.subr.mxu0 0.0
      %2150 = vmatpush1.msra.mxu0 %v309
      %2151 = vmatprep.subr.mxu0 0.0
      %2152 = vmatpush1.msra.mxu0 0.0
      %2153 = vmatprep.subr.mxu0 0.0
      %2154 = vmatpush1.msra.mxu0 0.0
      %2155 = vmatprep.subr.mxu0 0.0
      %2156 = vmatpush1.msra.mxu0 0.0
      %2157 = vmatprep.subr.mxu0 0.0
      %2158 = vmatpush1.msra.mxu0 0.0
      %2159 = vmatprep.subr.mxu0 0.0
      %2160 = vmatpush1.msra.mxu0 0.0
      %2161 = vmatprep.subr.mxu0 0.0
      %2162 = vmatpush1.msra.mxu0 0.0
      %2163 = vmatprep.subr.mxu0 0.0
      %2164 = vmatpush1.msra.mxu0 0.0
      %2165 = vmatprep.subr.mxu0 0.0
      %2166 = vmatpush1.msra.mxu0 0.0
      %2167 = vmatprep.subr.mxu0 0.0
      %2168 = vmatpush1.msra.mxu0 0.0
      %2169 = vmatprep.subr.mxu0 0.0
      %2170 = vmatpush1.msra.mxu0 0.0
      %2171 = vmatprep.subr.mxu0 0.0
      %2172 = vmatpush1.msra.mxu0 0.0
      %2173 = vmatprep.subr.mxu0 0.0
      %2174 = vmatpush1.msra.mxu0 0.0
      %2175 = vmatprep.subr.mxu0 0.0
      %2176 = vmatpush1.msra.mxu0 0.0
      %2177 = vmatprep.subr.mxu0 0.0
      %2178 = vmatpush1.msra.mxu0 0.0
      %2179 = vmatprep.subr.mxu0 0.0
      %2180 = vmatpush1.msra.mxu0 0.0
      %2181 = vmatprep.subr.mxu0 0.0
      %2182 = vmatpush1.msra.mxu0 0.0
      %2183 = vmatprep.subr.mxu0 0.0
      %2184 = vmatpush1.msra.mxu0 0.0
      %2185 = vmatprep.subr.mxu0 0.0
      %2186 = vmatpush1.msra.mxu0 0.0
      %2187 = vmatprep.subr.mxu0 0.0
      %2188 = vmatpush1.msra.mxu0 0.0
      %2189 = vmatprep.subr.mxu0 0.0
      %2190 = vmatpush1.msra.mxu0 0.0
      %2191 = vmatprep.subr.mxu0 0.0
      %2192 = vmatpush1.msra.mxu0 0.0
      %2193 = vmatprep.subr.mxu0 0.0
      %2194 = vmatpush1.msra.mxu0 0.0
      %2195 = vmatprep.subr.mxu0 0.0
      %2196 = vmatpush1.msra.mxu0 0.0
      %2197 = vmatprep.subr.mxu0 0.0
      %2198 = vmatpush1.msra.mxu0 0.0
      %2199 = vmatprep.subr.mxu0 0.0
      %2200 = vmatpush1.msra.mxu0 0.0
      %2201 = vmatprep.subr.mxu0 0.0
      %2202 = vmatpush1.msra.mxu0 0.0
      %2203 = vmatprep.subr.mxu0 0.0
      %2204 = vmatpush1.msra.mxu0 0.0
      %2205 = vmatprep.subr.mxu0 0.0
      %2206 = vmatpush1.msra.mxu0 0.0
      %2207 = vmatprep.subr.mxu0 0.0
      %2208 = vmatpush1.msra.mxu0 0.0
      %2209 = vmatprep.subr.mxu0 0.0
      %2210 = vmatpush1.msra.mxu0 0.0
      %2211 = vmatprep.subr.mxu0 0.0
      %2212 = vmatpush1.msra.mxu0 0.0
      %2213 = vmatprep.mubr.f32.mxu0 0.0
      %2214 = vmatmul.mubr.f32.gmra.mrb[0].mxu0 %v2067
      %v2215 = vpop.f32.mrb[0].mxu0
      %v2216 = vadd.f32 0.0, %v2215
      %v2217 = vpop.f32.mrb[0].mxu0
      %2218 = vmatprep.mubr.f32.mxu0 0.0
      %2219 = vmatmul.mubr.f32.gmra.mrb[0].mxu0 %v2070
      %v2220 = vpop.f32.mrb[0].mxu0
      %v2221 = vadd.f32 0.0, %v2220
      %v2222 = vpop.f32.mrb[0].mxu0
      %2223 = vdwg.mxu0
      %v2225 = vsel %vm590, %v2062, 0
      %v2228 = vsel %vm590, %v2063, 0
      %v2231 = vsel %vm594, %v2059, 0
      %v2234 = vsel %vm594, %v2060, 0
      %v2237 = vsel %vm594, %v2061, 0
      %2239 = vmatprep.subr.mxu0 %v2234
      %2240 = vmatpush1.msra.mxu0 %v2231
      %2241 = vmatprep.subr.mxu0 0.0
      %2242 = vmatpush1.msra.mxu0 0.0
      %2243 = vmatprep.subr.mxu0 0.0
      %2244 = vmatpush1.msra.mxu0 0.0
      %2245 = vmatprep.subr.mxu0 0.0
      %2246 = vmatpush1.msra.mxu0 0.0
      %2247 = vmatprep.subr.mxu0 0.0
      %2248 = vmatpush1.msra.mxu0 0.0
      %2249 = vmatprep.subr.mxu0 0.0
      %2250 = vmatpush1.msra.mxu0 0.0
      %2251 = vmatprep.subr.mxu0 0.0
      %2252 = vmatpush1.msra.mxu0 0.0
      %2253 = vmatprep.subr.mxu0 0.0
      %2254 = vmatpush1.msra.mxu0 0.0
      %2255 = vmatprep.subr.mxu0 0.0
      %2256 = vmatpush1.msra.mxu0 0.0
      %2257 = vmatprep.subr.mxu0 0.0
      %2258 = vmatpush1.msra.mxu0 0.0
      %2259 = vmatprep.subr.mxu0 0.0
      %2260 = vmatpush1.msra.mxu0 0.0
      %2261 = vmatprep.subr.mxu0 0.0
      %2262 = vmatpush1.msra.mxu0 0.0
      %2263 = vmatprep.subr.mxu0 0.0
      %2264 = vmatpush1.msra.mxu0 0.0
      %2265 = vmatprep.subr.mxu0 0.0
      %2266 = vmatpush1.msra.mxu0 0.0
      %2267 = vmatprep.subr.mxu0 0.0
      %2268 = vmatpush1.msra.mxu0 0.0
      %2269 = vmatprep.subr.mxu0 0.0
      %2270 = vmatpush1.msra.mxu0 0.0
      %2271 = vmatprep.subr.mxu0 0.0
      %2272 = vmatpush1.msra.mxu0 0.0
      %2273 = vmatprep.subr.mxu0 0.0
      %2274 = vmatpush1.msra.mxu0 0.0
      %2275 = vmatprep.subr.mxu0 0.0
      %2276 = vmatpush1.msra.mxu0 0.0
      %2277 = vmatprep.subr.mxu0 0.0
      %2278 = vmatpush1.msra.mxu0 0.0
      %2279 = vmatprep.subr.mxu0 0.0
      %2280 = vmatpush1.msra.mxu0 0.0
      %2281 = vmatprep.subr.mxu0 0.0
      %2282 = vmatpush1.msra.mxu0 0.0
      %2283 = vmatprep.subr.mxu0 0.0
      %2284 = vmatpush1.msra.mxu0 0.0
      %2285 = vmatprep.subr.mxu0 0.0
      %2286 = vmatpush1.msra.mxu0 0.0
      %2287 = vmatprep.subr.mxu0 0.0
      %2288 = vmatpush1.msra.mxu0 0.0
      %2289 = vmatprep.subr.mxu0 0.0
      %2290 = vmatpush1.msra.mxu0 0.0
      %2291 = vmatprep.subr.mxu0 0.0
      %2292 = vmatpush1.msra.mxu0 0.0
      %2293 = vmatprep.subr.mxu0 0.0
      %2294 = vmatpush1.msra.mxu0 0.0
      %2295 = vmatprep.subr.mxu0 0.0
      %2296 = vmatpush1.msra.mxu0 0.0
      %2297 = vmatprep.subr.mxu0 0.0
      %2298 = vmatpush1.msra.mxu0 0.0
      %2299 = vmatprep.subr.mxu0 0.0
      %2300 = vmatpush1.msra.mxu0 0.0
      %2301 = vmatprep.subr.mxu0 0.0
      %2302 = vmatpush1.msra.mxu0 0.0
      %2303 = vmatprep.mubr.f32.mxu0 0.0
      %2304 = vmatmul.mubr.f32.gmra.mrb[0].mxu0 %v2225
      %v2305 = vpop.f32.mrb[0].mxu0
      %v2306 = vadd.f32 %v2139, %v2305
      %v2307 = vpop.f32.mrb[0].mxu0
      %v2308 = vadd.f32 %v2141, %v2307
      %2309 = vmatprep.mubr.f32.mxu0 0.0
      %2310 = vmatmul.mubr.f32.gmra.mrb[0].mxu0 %v2228
      %v2311 = vpop.f32.mrb[0].mxu0
      %v2312 = vadd.f32 %v2145, %v2311
      %v2313 = vpop.f32.mrb[0].mxu0
      %v2314 = vadd.f32 %v2147, %v2313
      %2315 = vdwg.mxu0
      %2316 = vmatprep.subr.mxu0 0.0
      %2317 = vmatpush1.msra.mxu0 %v2237
      %2318 = vmatprep.subr.mxu0 0.0
      %2319 = vmatpush1.msra.mxu0 0.0
      %2320 = vmatprep.subr.mxu0 0.0
      %2321 = vmatpush1.msra.mxu0 0.0
      %2322 = vmatprep.subr.mxu0 0.0
      %2323 = vmatpush1.msra.mxu0 0.0
      %2324 = vmatprep.subr.mxu0 0.0
      %2325 = vmatpush1.msra.mxu0 0.0
      %2326 = vmatprep.subr.mxu0 0.0
      %2327 = vmatpush1.msra.mxu0 0.0
      %2328 = vmatprep.subr.mxu0 0.0
      %2329 = vmatpush1.msra.mxu0 0.0
      %2330 = vmatprep.subr.mxu0 0.0
      %2331 = vmatpush1.msra.mxu0 0.0
      %2332 = vmatprep.subr.mxu0 0.0
      %2333 = vmatpush1.msra.mxu0 0.0
      %2334 = vmatprep.subr.mxu0 0.0
      %2335 = vmatpush1.msra.mxu0 0.0
      %2336 = vmatprep.subr.mxu0 0.0
      %2337 = vmatpush1.msra.mxu0 0.0
      %2338 = vmatprep.subr.mxu0 0.0
      %2339 = vmatpush1.msra.mxu0 0.0
      %2340 = vmatprep.subr.mxu0 0.0
      %2341 = vmatpush1.msra.mxu0 0.0
      %2342 = vmatprep.subr.mxu0 0.0
      %2343 = vmatpush1.msra.mxu0 0.0
      %2344 = vmatprep.subr.mxu0 0.0
      %2345 = vmatpush1.msra.mxu0 0.0
      %2346 = vmatprep.subr.mxu0 0.0
      %2347 = vmatpush1.msra.mxu0 0.0
      %2348 = vmatprep.subr.mxu0 0.0
      %2349 = vmatpush1.msra.mxu0 0.0
      %2350 = vmatprep.subr.mxu0 0.0
      %2351 = vmatpush1.msra.mxu0 0.0
      %2352 = vmatprep.subr.mxu0 0.0
      %2353 = vmatpush1.msra.mxu0 0.0
      %2354 = vmatprep.subr.mxu0 0.0
      %2355 = vmatpush1.msra.mxu0 0.0
      %2356 = vmatprep.subr.mxu0 0.0
      %2357 = vmatpush1.msra.mxu0 0.0
      %2358 = vmatprep.subr.mxu0 0.0
      %2359 = vmatpush1.msra.mxu0 0.0
      %2360 = vmatprep.subr.mxu0 0.0
      %2361 = vmatpush1.msra.mxu0 0.0
      %2362 = vmatprep.subr.mxu0 0.0
      %2363 = vmatpush1.msra.mxu0 0.0
      %2364 = vmatprep.subr.mxu0 0.0
      %2365 = vmatpush1.msra.mxu0 0.0
      %2366 = vmatprep.subr.mxu0 0.0
      %2367 = vmatpush1.msra.mxu0 0.0
      %2368 = vmatprep.subr.mxu0 0.0
      %2369 = vmatpush1.msra.mxu0 0.0
      %2370 = vmatprep.subr.mxu0 0.0
      %2371 = vmatpush1.msra.mxu0 0.0
      %2372 = vmatprep.subr.mxu0 0.0
      %2373 = vmatpush1.msra.mxu0 0.0
      %2374 = vmatprep.subr.mxu0 0.0
      %2375 = vmatpush1.msra.mxu0 0.0
      %2376 = vmatprep.subr.mxu0 0.0
      %2377 = vmatpush1.msra.mxu0 0.0
      %2378 = vmatprep.subr.mxu0 0.0
      %2379 = vmatpush1.msra.mxu0 0.0
      %2380 = vmatprep.mubr.f32.mxu0 0.0
      %2381 = vmatmul.mubr.f32.gmra.mrb[0].mxu0 %v2225
      %v2382 = vpop.f32.mrb[0].mxu0
      %v2383 = vadd.f32 %v2216, %v2382
      %v2384 = vpop.f32.mrb[0].mxu0
      %2385 = vmatprep.mubr.f32.mxu0 0.0
      %2386 = vmatmul.mubr.f32.gmra.mrb[0].mxu0 %v2228
      %v2387 = vpop.f32.mrb[0].mxu0
      %v2388 = vadd.f32 %v2221, %v2387
      %v2389 = vpop.f32.mrb[0].mxu0
      %2390 = vdwg.mxu0
      %v2391 = vld [vmem:[%s7] sm:$0xff]
      %v2392 = vld [vmem:[%s7 + $0x8] sm:$0xff]
      %2394 = vset.pattern.permute.xlu0 0
      %2395 = vperm.xlu0 %2394, %v2391
      %v2396 = vpop.permute.xlu0 %2395
      %2399 = vset.pattern.permute.xlu0 0
      %2400 = vperm.xlu0 %2399, %v2392
      %v2401 = vpop.permute.xlu0 %2400
      %v2403 = vadd.f32 %v2306, %v2396
      %v2404 = vadd.f32 %v2308, %v2396
      %v2405 = vadd.f32 %v2383, %v2396
      %v2406 = vadd.f32 %v2312, %v2401
      %v2407 = vadd.f32 %v2314, %v2401
      %v2408 = vadd.f32 %v2388, %v2401
      %v2409 = vmax.f32 %v2403, 0.0
      %v2410 = vmax.f32 %v2404, 0.0
      %v2411 = vmax.f32 %v2405, 0.0
      %v2412 = vmax.f32 %v2406, 0.0
      %v2413 = vmax.f32 %v2407, 0.0
      %v2414 = vmax.f32 %v2408, 0.0
      %2415 = vst [vmem:[%s305] sm:$0xff] %v2409
      %2416 = vst [vmem:[%s305 + $0x8] sm:$0xff] %v2410
      %2417 = vst [vmem:[%s305 + $0x10] sm:$0xff] %v2411
      %2418 = vst [vmem:[%s305 + $0x18] sm:$0xff] %v2412
      %2419 = vst [vmem:[%s305 + $0x20] sm:$0xff] %v2413
      %2420 = vst [vmem:[%s305 + $0x28] sm:$0xff] %v2414
      %p2421 = scmp.lt.s32.totalorder %s19, 1
      %s2422 = scalar_select %p2421, %s19, 1
      %s2423 = smul.addr %s2422, 6
      %s2424 = smul.addr %s2423, 8
      %s2425 = scalar_lea.vmem %s8, %s2424
      // Predicated region
      $region53: #{shufflenet_unit_pallas.1} parent=51 // pred_check
        %p2426 = pneg %p210
      $region54: #{shufflenet_unit_pallas.1} parent=51 // pred_check_branch
        %2428 = sbr.rel (%p2426) target = $region56
      $region55: #{shufflenet_unit_pallas.1} parent=51 // pred_region
        _
      $region56: #{shufflenet_unit_pallas.1} parent=51 // pred_fallthru
        _
    $region52: #{shufflenet_unit_pallas.1} parent=5 // pred_fallthru
      _
    %p2429 = scmp.le.s32.totalorder 2, %s14
    // Predicated region
    $region57: #{shufflenet_unit_pallas.1} parent=5 // pred_check
      %p2430 = pneg %p2429
    $region58: #{shufflenet_unit_pallas.1} parent=5 // pred_check_branch
      %2432 = sbr.rel (%p2430) target = $region60
    $region59: #{shufflenet_unit_pallas.1} parent=5 // pred_region
      %s2433 = ssub.s32 %s14, 2
      // Predicated region
      $region61: #{shufflenet_unit_pallas.1} parent=59 // pred_check
        %p2434 = pneg %p216
      $region62: #{shufflenet_unit_pallas.1} parent=59 // pred_check_branch
        %2436 = sbr.rel (%p2434) target = $region64
      $region63: #{shufflenet_unit_pallas.1} parent=59 // pred_region
        %p2437 = scmp.lt.s32.totalorder %s20, 1
        %s2438 = scalar_select %p2437, %s20, 1
        %s2439 = smul.addr %s2438, 6
        %s2440 = smul.addr %s2439, 8
        %s2441 = scalar_lea.vmem %s8, %s2440
      $region64: #{shufflenet_unit_pallas.1} parent=59 // pred_fallthru
        _
    $region60: #{shufflenet_unit_pallas.1} parent=5 // pred_fallthru
      _
  $region6: #{shufflenet_unit_pallas.1} parent=0 // loop_footer
    %s18 = sadd.s32 1, %s14
  $region7: #{shufflenet_unit_pallas.1} parent=0 // loop_footer_branch
    %13 = sbr.rel target = $region3
  $region8: #{shufflenet_unit_pallas.1} parent=0 // loop_exit
    _

</llo_original>
